<compile_context>
chip_gen: v6e
topology: v6e:2x2x1
jax: 0.10.0
libtpu: 0.0.40
codegen_flags: <defaults>
</compile_context>

<pallas_src>
import jax
import jax.numpy as jnp
from jax.experimental import pallas as pl
from jax.experimental.pallas import tpu as pltpu

# ----------------------------- small synthetic config -----------------------
B = 2                      # batch
C = 3                      # image channels (RGB, as CLIP conv1 expects)
IMG = 16                   # image height / width
PATCH = 4                  # patch size (conv kernel == stride)
GRID = IMG // PATCH
N_PATCH = GRID * GRID      # 16 patches
SEQ = N_PATCH + 1          # +1 class token -> 17
D = 32                     # transformer width
HEADS = 4
HEAD_DIM = D // HEADS
MLP = 4 * D
LAYERS = 2
EPS = 1e-5                 # nn.LayerNorm default
PPC = C * PATCH * PATCH    # flattened patch length = 48


# ----------------------------- in-kernel helpers -----------------------------
def _recip(a):
    # EUP approx reciprocal + one Newton step (~f32 accuracy), off the VALU.
    y = pl.reciprocal(a, approx=True)
    return y * (2.0 - a * y)


def _layer_norm(x, g, b):
    mu = jnp.mean(x, axis=-1, keepdims=True)
    xc = x - mu
    var = jnp.mean(xc * xc, axis=-1, keepdims=True)
    return xc * jax.lax.rsqrt(var + EPS) * g + b


def _erf(x):
    # Abramowitz & Stegun 7.1.26, |error| < 1.5e-7 -> exact-GELU semantics.
    a1, a2, a3, a4, a5 = 0.254829592, -0.284496736, 1.421413741, -1.453152027, 1.061405429
    p = 0.3275911
    sgn = jnp.where(x >= 0.0, 1.0, -1.0)
    ax = jnp.abs(x)
    t = _recip(1.0 + p * ax)                       # divide on the EUP
    poly = ((((a5 * t + a4) * t + a3) * t + a2) * t + a1) * t
    return sgn * (1.0 - poly * jnp.exp(-ax * ax))


def _gelu(x):
    # exact (erf) GELU, matching open_clip's default nn.GELU
    return 0.5 * x * (1.0 + _erf(x * 0.7071067811865475))


# ----------------------------- fused Pallas kernel ----------------------------
def clip_fused_kernel(
    patches_ref,            # (1, SEQ, PPC) f32  (row 0 zero -> class-token slot)
    w_patch_ref,            # (PPC, D)  bf16     conv1 weight, (C,Ph,Pw) flattened
    base_ref,               # (SEQ, D)  f32      class token + positional embedding
    lnp_g_ref, lnp_b_ref,   # (1, D)    f32      ln_pre
    wqkv_ref, bqkv_ref,     # (1, D, 3D) bf16 / (1, 1, 3D) f32  (q-scale folded in)
    wo_ref, bo_ref,         # (1, D, D)  bf16 / (1, 1, D)  f32
    ln1_g_ref, ln1_b_ref,   # (1, 1, D) f32
    ln2_g_ref, ln2_b_ref,   # (1, 1, D) f32
    w1_ref, b1_ref,         # (1, D, MLP) bf16 / (1, 1, MLP) f32
    w2_ref, b2_ref,         # (1, MLP, D) bf16 / (1, 1, D)   f32
    o_ref,                  # (1, 1, D) f32 output block (this batch element)
    x_ref,                  # VMEM scratch (SEQ, D) f32: persistent residual stream
):
    f32, bf16 = jnp.float32, jnp.bfloat16
    l = pl.program_id(1)

    # --- layer 0: conv1 (stride==kernel, no bias) as one matmul, +cls/pos, ln_pre
    @pl.when(l == 0)
    def _():
        emb = jnp.dot(patches_ref[0].astype(bf16), w_patch_ref[...],
                      preferred_element_type=f32)                    # (SEQ, D)
        x0 = emb + base_ref[...]
        # patch_dropout is identity (prob=0 / eval); ln_pre:
        x_ref[...] = _layer_norm(x0, lnp_g_ref[...], lnp_b_ref[...])

    x = x_ref[...]                                                   # (SEQ, D) f32

    # ------------------- attention branch (pre-LN) -------------------
    h = _layer_norm(x, ln1_g_ref[0], ln1_b_ref[0])
    # single fused QKV projection: (SEQ, D) @ (D, 3D)
    qkv = jnp.dot(h.astype(bf16), wqkv_ref[0],
                  preferred_element_type=f32) + bqkv_ref[0]          # (SEQ, 3D)

    heads_out = []
    for hd in range(HEADS):                      # cheap static lane slices
        q = qkv[:, hd * HEAD_DIM:(hd + 1) * HEAD_DIM]                # (SEQ, HD)
        k = qkv[:, D + hd * HEAD_DIM:D + (hd + 1) * HEAD_DIM]
        v = qkv[:, 2 * D + hd * HEAD_DIM:2 * D + (hd + 1) * HEAD_DIM]
        # q @ k.T without an explicit transpose (1/sqrt(HD) already in wqkv/bqkv)
        s = jax.lax.dot_general(q.astype(bf16), k.astype(bf16),
                                (((1,), (1,)), ((), ())),
                                preferred_element_type=f32)          # (SEQ, SEQ)
        m = jnp.max(s, axis=-1, keepdims=True)
        p = jnp.exp(s - m)
        p = p * _recip(jnp.sum(p, axis=-1, keepdims=True))
        heads_out.append(jnp.dot(p.astype(bf16), v.astype(bf16),
                                 preferred_element_type=f32))        # (SEQ, HD)

    attn = jnp.concatenate(heads_out, axis=-1)                       # (SEQ, D)
    attn = jnp.dot(attn.astype(bf16), wo_ref[0],
                   preferred_element_type=f32) + bo_ref[0]           # single out-proj
    x = x + attn

    # ------------------------- MLP branch -----------------------------
    h2 = _layer_norm(x, ln2_g_ref[0], ln2_b_ref[0])
    u = jnp.dot(h2.astype(bf16), w1_ref[0],
                preferred_element_type=f32) + b1_ref[0]              # (SEQ, MLP)
    u = _gelu(u)
    u = jnp.dot(u.astype(bf16), w2_ref[0],
                preferred_element_type=f32) + b2_ref[0]              # (SEQ, D)
    x = x + u

    x_ref[...] = x

    # --- final layer: mean over the sequence axis (torch.mean(x, 0) in LND) ---
    @pl.when(l == LAYERS - 1)
    def _():
        pooled = jnp.sum(x, axis=0, keepdims=True) * (1.0 / SEQ)     # (1, D)
        o_ref[...] = pooled.reshape(1, 1, D).astype(o_ref.dtype)


# ----------------------------- pallas_call wrapper ----------------------------
def clip_forward_fused(patches, p):
    operands = [
        patches, p["w_patch"], p["base"], p["ln_pre_g"], p["ln_pre_b"],
        p["wqkv"], p["bqkv"], p["wo"], p["bo"],
        p["ln1_g"], p["ln1_b"], p["ln2_g"], p["ln2_b"],
        p["w1"], p["b1"], p["w2"], p["b2"],
    ]

    def const_spec(a):
        nd = a.ndim
        return pl.BlockSpec(a.shape, lambda b, l, nd=nd: (0,) * nd)

    def layer_spec(a):
        nd = a.ndim
        return pl.BlockSpec((1,) + a.shape[1:],
                            lambda b, l, nd=nd: (l,) + (0,) * (nd - 1))

    in_specs = [
        pl.BlockSpec((1, SEQ, PPC), lambda b, l: (b, 0, 0)),   # patches (per batch)
        const_spec(p["w_patch"]),
        const_spec(p["base"]),
        const_spec(p["ln_pre_g"]),
        const_spec(p["ln_pre_b"]),
        layer_spec(p["wqkv"]),
        layer_spec(p["bqkv"]),
        layer_spec(p["wo"]),
        layer_spec(p["bo"]),
        layer_spec(p["ln1_g"]),
        layer_spec(p["ln1_b"]),
        layer_spec(p["ln2_g"]),
        layer_spec(p["ln2_b"]),
        layer_spec(p["w1"]),
        layer_spec(p["b1"]),
        layer_spec(p["w2"]),
        layer_spec(p["b2"]),
    ]

    return pl.pallas_call(
        clip_fused_kernel,
        out_shape=jax.ShapeDtypeStruct((B, 1, D), jnp.float32),
        grid=(B, LAYERS),
        in_specs=in_specs,
        out_specs=pl.BlockSpec((1, 1, D), lambda b, l: (b, 0, 0)),
        scratch_shapes=[pltpu.VMEM((SEQ, D), jnp.float32)],   # resident residual
        compiler_params=pltpu.CompilerParams(
            # batch axis shards across v7x's 2 TensorCores; layer axis carries
            # the residual-stream dependency.
            dimension_semantics=("parallel", "arbitrary"),
            vmem_limit_bytes=32 * 1024 * 1024,
        ),
    )(*operands)


# ----------------------------- parameter construction -------------------------
def init_params(key):
    f32, bf16 = jnp.float32, jnp.bfloat16
    std = 0.02
    ks = iter(jax.random.split(key, 3 + 8 * LAYERS))

    params = {}

    # conv1: torch weight (D, C, P, P), no bias -> (PPC, D), bf16 for the MXU
    w_conv = jax.random.normal(next(ks), (D, C, PATCH, PATCH), f32) * std
    params["w_patch"] = w_conv.reshape(D, PPC).T.astype(bf16)

    class_embedding = jax.random.normal(next(ks), (D,), f32) * std
    pos = jax.random.normal(next(ks), (SEQ, D), f32) * std
    # row 0 = class_embedding + pos[0] (the zero "patch" row supplies the rest)
    params["base"] = jnp.concatenate(
        [class_embedding[None, :] + pos[0:1], pos[1:]], axis=0)       # (SEQ, D)

    params["ln_pre_g"] = jnp.ones((1, D), f32)
    params["ln_pre_b"] = jnp.zeros((1, D), f32)

    scale = HEAD_DIM ** -0.5

    acc = {k: [] for k in ["wqkv", "bqkv", "wo", "bo",
                           "ln1_g", "ln1_b", "ln2_g", "ln2_b",
                           "w1", "b1", "w2", "b2"]}
    for _l in range(LAYERS):
        w_in = jax.random.normal(next(ks), (3 * D, D), f32) * std    # in_proj_weight
        b_in = jax.random.normal(next(ks), (3 * D,), f32) * std      # in_proj_bias
        w_out = jax.random.normal(next(ks), (D, D), f32) * std       # out_proj.weight
        b_out = jax.random.normal(next(ks), (D,), f32) * std
        w_fc1 = jax.random.normal(next(ks), (MLP, D), f32) * std     # c_fc.weight
        b_fc1 = jax.random.normal(next(ks), (MLP,), f32) * std
        w_fc2 = jax.random.normal(next(ks), (D, MLP), f32) * std     # c_proj.weight
        b_fc2 = jax.random.normal(next(ks), (D,), f32) * std

        # fused QKV weight (D, 3D): [Wq.T*scale | Wk.T | Wv.T]  (scale hoisted)
        wq = w_in[0:D].T * scale
        wk = w_in[D:2 * D].T
        wv = w_in[2 * D:].T
        acc["wqkv"].append(jnp.concatenate([wq, wk, wv], axis=1).astype(bf16))
        acc["bqkv"].append(jnp.concatenate(
            [b_in[0:D] * scale, b_in[D:2 * D], b_in[2 * D:]])[None, :])
        acc["wo"].append(w_out.T.astype(bf16))          # (D, D): concat(heads) @ Wo.T
        acc["bo"].append(b_out[None, :])
        acc["ln1_g"].append(jnp.ones((1, D), f32))
        acc["ln1_b"].append(jnp.zeros((1, D), f32))
        acc["ln2_g"].append(jnp.ones((1, D), f32))
        acc["ln2_b"].append(jnp.zeros((1, D), f32))
        acc["w1"].append(w_fc1.T.astype(bf16))
        acc["b1"].append(b_fc1[None, :])
        acc["w2"].append(w_fc2.T.astype(bf16))
        acc["b2"].append(b_fc2[None, :])

    for k, v in acc.items():
        params[k] = jnp.stack(v, axis=0)                # leading LAYERS dim
    return params


# ----------------------------- forward ----------------------------------------
def clip_vision_encoder_forward(images_nchw, params):
    # conv1-as-patch-extraction glue (layout plumbing; (C, Ph, Pw) order matches
    # the torch conv-weight flattening)
    x = images_nchw.reshape(B, C, GRID, PATCH, GRID, PATCH)
    x = x.transpose(0, 2, 4, 1, 3, 5).reshape(B, N_PATCH, PPC)
    # zero "patch" row per batch at the class-token slot: conv1 has no bias, so
    # that row stays zero and `base` supplies class_embedding + pos in-kernel.
    patches = jnp.concatenate([jnp.zeros((B, 1, PPC), x.dtype), x], axis=1)
    out = clip_forward_fused(patches, params)            # (B, 1, D)
    return out.reshape(B, D)


# ----------------------------- main --------------------------------------------
if __name__ == "__main__":
    key = jax.random.PRNGKey(0)
    k_img, k_par = jax.random.split(key)
    images = jax.random.normal(k_img, (B, C, IMG, IMG), jnp.float32)
    params = init_params(k_par)

    out = jax.jit(clip_vision_encoder_forward)(images, params)
    out = jax.block_until_ready(out)
    assert out.shape == (B, D), out.shape
    assert bool(jnp.all(jnp.isfinite(out)))
    print("KERNEL_OK")
</pallas_src>

<mosaic_0001>
module attributes {stable_mosaic.version = 11 : i64} {
  func.func @clip_fused_kernel(%arg0: i32, %arg1: i32, %arg2: memref<1x17x48xf32, #tpu.memory_space<vmem>>, %arg3: memref<48x32xbf16, #tpu.memory_space<vmem>>, %arg4: memref<17x32xf32, #tpu.memory_space<vmem>>, %arg5: memref<1x32xf32, #tpu.memory_space<vmem>>, %arg6: memref<1x32xf32, #tpu.memory_space<vmem>>, %arg7: memref<1x32x96xbf16, #tpu.memory_space<vmem>>, %arg8: memref<1x1x96xf32, #tpu.memory_space<vmem>>, %arg9: memref<1x32x32xbf16, #tpu.memory_space<vmem>>, %arg10: memref<1x1x32xf32, #tpu.memory_space<vmem>>, %arg11: memref<1x1x32xf32, #tpu.memory_space<vmem>>, %arg12: memref<1x1x32xf32, #tpu.memory_space<vmem>>, %arg13: memref<1x1x32xf32, #tpu.memory_space<vmem>>, %arg14: memref<1x1x32xf32, #tpu.memory_space<vmem>>, %arg15: memref<1x32x128xbf16, #tpu.memory_space<vmem>>, %arg16: memref<1x1x128xf32, #tpu.memory_space<vmem>>, %arg17: memref<1x128x32xbf16, #tpu.memory_space<vmem>>, %arg18: memref<1x1x32xf32, #tpu.memory_space<vmem>>, %arg19: memref<1x1x32xf32, #tpu.memory_space<vmem>>, %arg20: memref<17x32xf32, #tpu.memory_space<vmem>>) attributes {dimension_semantics = [#tpu.dimension_semantics<parallel>, #tpu.dimension_semantics<arbitrary>], iteration_bounds = array<i64: 2, 2>, scalar_prefetch = 0 : i64, scratch_operands = 1 : i64, tpu.core_type = #tpu.core_type<tc>, window_params = [{transform_indices = @transform_0, window_bounds = array<i64: 1, 17, 48>}, {pipeline_mode = #tpu.pipeline_mode<synchronous>, transform_indices = @transform_1, window_bounds = array<i64: 48, 32>}, {pipeline_mode = #tpu.pipeline_mode<synchronous>, transform_indices = @transform_2, window_bounds = array<i64: 17, 32>}, {pipeline_mode = #tpu.pipeline_mode<synchronous>, transform_indices = @transform_3, window_bounds = array<i64: 1, 32>}, {pipeline_mode = #tpu.pipeline_mode<synchronous>, transform_indices = @transform_4, window_bounds = array<i64: 1, 32>}, {transform_indices = @transform_5, window_bounds = array<i64: 1, 32, 96>}, {transform_indices = @transform_6, window_bounds = array<i64: 1, 1, 96>}, {transform_indices = @transform_7, window_bounds = array<i64: 1, 32, 32>}, {transform_indices = @transform_8, window_bounds = array<i64: 1, 1, 32>}, {transform_indices = @transform_9, window_bounds = array<i64: 1, 1, 32>}, {transform_indices = @transform_10, window_bounds = array<i64: 1, 1, 32>}, {transform_indices = @transform_11, window_bounds = array<i64: 1, 1, 32>}, {transform_indices = @transform_12, window_bounds = array<i64: 1, 1, 32>}, {transform_indices = @transform_13, window_bounds = array<i64: 1, 32, 128>}, {transform_indices = @transform_14, window_bounds = array<i64: 1, 1, 128>}, {transform_indices = @transform_15, window_bounds = array<i64: 1, 128, 32>}, {transform_indices = @transform_16, window_bounds = array<i64: 1, 1, 32>}, {transform_indices = @transform_17, window_bounds = array<i64: 1, 1, 32>}]} {
    %c0_i32 = arith.constant 0 : i32
    %0 = arith.cmpi eq, %arg1, %c0_i32 : i32
    %1 = arith.extui %0 : i1 to i32
    %c0_i32_0 = arith.constant 0 : i32
    %2 = arith.cmpi ne, %1, %c0_i32_0 : i32
    scf.if %2 {
      %c0_90 = arith.constant 0 : index
      %c0_91 = arith.constant 0 : index
      %c0_92 = arith.constant 0 : index
      %227 = vector.load %arg2[%c0_90, %c0_91, %c0_92] : memref<1x17x48xf32, #tpu.memory_space<vmem>>, vector<1x17x48xf32>
      %228 = vector.shape_cast %227 : vector<1x17x48xf32> to vector<17x48xf32>
      %229 = arith.truncf %228 : vector<17x48xf32> to vector<17x48xbf16>
      %c0_93 = arith.constant 0 : index
      %c0_94 = arith.constant 0 : index
      %230 = vector.load %arg3[%c0_93, %c0_94] : memref<48x32xbf16, #tpu.memory_space<vmem>>, vector<48x32xbf16>
      %cst_95 = arith.constant dense<0.000000e+00> : vector<17x32xf32>
      %231 = tpu.matmul %229, %230, %cst_95 {dimension_numbers = #tpu.dot_dimension_numbers<[1], [0], [0], [1], [0, 0, 1, 1], [], []>} : vector<17x48xbf16>, vector<48x32xbf16>, vector<17x32xf32> -> vector<17x32xf32>
      %c0_96 = arith.constant 0 : index
      %c0_97 = arith.constant 0 : index
      %232 = vector.load %arg4[%c0_96, %c0_97] : memref<17x32xf32, #tpu.memory_space<vmem>>, vector<17x32xf32>
      %233 = arith.addf %231, %232 : vector<17x32xf32>
      %c0_98 = arith.constant 0 : index
      %c0_99 = arith.constant 0 : index
      %234 = vector.load %arg5[%c0_98, %c0_99] : memref<1x32xf32, #tpu.memory_space<vmem>>, vector<1x32xf32>
      %c0_100 = arith.constant 0 : index
      %c0_101 = arith.constant 0 : index
      %235 = vector.load %arg6[%c0_100, %c0_101] : memref<1x32xf32, #tpu.memory_space<vmem>>, vector<1x32xf32>
      %cst_102 = arith.constant dense<0.000000e+00> : vector<17xf32>
      %236 = vector.multi_reduction <add>, %233, %cst_102 [1] : vector<17x32xf32> to vector<17xf32>
      %237 = vector.shape_cast %236 : vector<17xf32> to vector<17x1xf32>
      %cst_103 = arith.constant 3.200000e+01 : f32
      %238 = vector.broadcast %cst_103 : f32 to vector<17x1xf32>
      %239 = arith.divf %237, %238 : vector<17x1xf32>
      %240 = vector.broadcast %239 : vector<17x1xf32> to vector<17x32xf32>
      %241 = arith.subf %233, %240 : vector<17x32xf32>
      %242 = arith.mulf %241, %241 : vector<17x32xf32>
      %cst_104 = arith.constant dense<0.000000e+00> : vector<17xf32>
      %243 = vector.multi_reduction <add>, %242, %cst_104 [1] : vector<17x32xf32> to vector<17xf32>
      %244 = vector.shape_cast %243 : vector<17xf32> to vector<17x1xf32>
      %cst_105 = arith.constant 3.200000e+01 : f32
      %245 = vector.broadcast %cst_105 : f32 to vector<17x1xf32>
      %246 = arith.divf %244, %245 : vector<17x1xf32>
      %cst_106 = arith.constant 9.99999974E-6 : f32
      %247 = vector.broadcast %cst_106 : f32 to vector<17x1xf32>
      %248 = arith.addf %246, %247 : vector<17x1xf32>
      %249 = math.rsqrt %248 : vector<17x1xf32>
      %250 = vector.broadcast %249 : vector<17x1xf32> to vector<17x32xf32>
      %251 = arith.mulf %241, %250 : vector<17x32xf32>
      %252 = vector.broadcast %234 : vector<1x32xf32> to vector<17x32xf32>
      %253 = arith.mulf %251, %252 : vector<17x32xf32>
      %254 = vector.broadcast %235 : vector<1x32xf32> to vector<17x32xf32>
      %255 = arith.addf %253, %254 : vector<17x32xf32>
      %c0_107 = arith.constant 0 : index
      %c0_108 = arith.constant 0 : index
      %256 = vector.load %arg20[%c0_107, %c0_108] : memref<17x32xf32, #tpu.memory_space<vmem>>, vector<17x32xf32>
      tpu.vector_store %arg20[%c0_107, %c0_108], %255 {strides = array<i32>} : memref<17x32xf32, #tpu.memory_space<vmem>>, vector<17x32xf32>,
    } else {
    }
    %c0 = arith.constant 0 : index
    %c0_1 = arith.constant 0 : index
    %3 = vector.load %arg20[%c0, %c0_1] : memref<17x32xf32, #tpu.memory_space<vmem>>, vector<17x32xf32>
    %c0_2 = arith.constant 0 : index
    %c0_3 = arith.constant 0 : index
    %c0_4 = arith.constant 0 : index
    %4 = vector.load %arg11[%c0_2, %c0_3, %c0_4] : memref<1x1x32xf32, #tpu.memory_space<vmem>>, vector<1x1x32xf32>
    %5 = vector.shape_cast %4 : vector<1x1x32xf32> to vector<1x32xf32>
    %c0_5 = arith.constant 0 : index
    %c0_6 = arith.constant 0 : index
    %c0_7 = arith.constant 0 : index
    %6 = vector.load %arg12[%c0_5, %c0_6, %c0_7] : memref<1x1x32xf32, #tpu.memory_space<vmem>>, vector<1x1x32xf32>
    %7 = vector.shape_cast %6 : vector<1x1x32xf32> to vector<1x32xf32>
    %cst = arith.constant dense<0.000000e+00> : vector<17xf32>
    %8 = vector.multi_reduction <add>, %3, %cst [1] : vector<17x32xf32> to vector<17xf32>
    %9 = vector.shape_cast %8 : vector<17xf32> to vector<17x1xf32>
    %cst_8 = arith.constant 3.200000e+01 : f32
    %10 = vector.broadcast %cst_8 : f32 to vector<17x1xf32>
    %11 = arith.divf %9, %10 : vector<17x1xf32>
    %12 = vector.broadcast %11 : vector<17x1xf32> to vector<17x32xf32>
    %13 = arith.subf %3, %12 : vector<17x32xf32>
    %14 = arith.mulf %13, %13 : vector<17x32xf32>
    %cst_9 = arith.constant dense<0.000000e+00> : vector<17xf32>
    %15 = vector.multi_reduction <add>, %14, %cst_9 [1] : vector<17x32xf32> to vector<17xf32>
    %16 = vector.shape_cast %15 : vector<17xf32> to vector<17x1xf32>
    %cst_10 = arith.constant 3.200000e+01 : f32
    %17 = vector.broadcast %cst_10 : f32 to vector<17x1xf32>
    %18 = arith.divf %16, %17 : vector<17x1xf32>
    %cst_11 = arith.constant 9.99999974E-6 : f32
    %19 = vector.broadcast %cst_11 : f32 to vector<17x1xf32>
    %20 = arith.addf %18, %19 : vector<17x1xf32>
    %21 = math.rsqrt %20 : vector<17x1xf32>
    %22 = vector.broadcast %21 : vector<17x1xf32> to vector<17x32xf32>
    %23 = arith.mulf %13, %22 : vector<17x32xf32>
    %24 = vector.broadcast %5 : vector<1x32xf32> to vector<17x32xf32>
    %25 = arith.mulf %23, %24 : vector<17x32xf32>
    %26 = vector.broadcast %7 : vector<1x32xf32> to vector<17x32xf32>
    %27 = arith.addf %25, %26 : vector<17x32xf32>
    %28 = arith.truncf %27 : vector<17x32xf32> to vector<17x32xbf16>
    %c0_12 = arith.constant 0 : index
    %c0_13 = arith.constant 0 : index
    %c0_14 = arith.constant 0 : index
    %29 = vector.load %arg7[%c0_12, %c0_13, %c0_14] : memref<1x32x96xbf16, #tpu.memory_space<vmem>>, vector<1x32x96xbf16>
    %30 = vector.shape_cast %29 : vector<1x32x96xbf16> to vector<32x96xbf16>
    %cst_15 = arith.constant dense<0.000000e+00> : vector<17x96xf32>
    %31 = tpu.matmul %28, %30, %cst_15 {dimension_numbers = #tpu.dot_dimension_numbers<[1], [0], [0], [1], [0, 0, 1, 1], [], []>} : vector<17x32xbf16>, vector<32x96xbf16>, vector<17x96xf32> -> vector<17x96xf32>
    %c0_16 = arith.constant 0 : index
    %c0_17 = arith.constant 0 : index
    %c0_18 = arith.constant 0 : index
    %32 = vector.load %arg8[%c0_16, %c0_17, %c0_18] : memref<1x1x96xf32, #tpu.memory_space<vmem>>, vector<1x1x96xf32>
    %33 = vector.shape_cast %32 : vector<1x1x96xf32> to vector<1x96xf32>
    %34 = vector.broadcast %33 : vector<1x96xf32> to vector<17x96xf32>
    %35 = arith.addf %31, %34 : vector<17x96xf32>
    %36 = vector.extract_strided_slice %35 {offsets = [0, 0], sizes = [17, 8], strides = [1, 1]} : vector<17x96xf32> to vector<17x8xf32>
    %37 = vector.extract_strided_slice %35 {offsets = [0, 32], sizes = [17, 8], strides = [1, 1]} : vector<17x96xf32> to vector<17x8xf32>
    %38 = vector.extract_strided_slice %35 {offsets = [0, 64], sizes = [17, 8], strides = [1, 1]} : vector<17x96xf32> to vector<17x8xf32>
    %39 = arith.truncf %36 : vector<17x8xf32> to vector<17x8xbf16>
    %40 = arith.truncf %37 : vector<17x8xf32> to vector<17x8xbf16>
    %cst_19 = arith.constant dense<0.000000e+00> : vector<17x17xf32>
    %41 = tpu.matmul %39, %40, %cst_19 {dimension_numbers = #tpu.dot_dimension_numbers<[1], [1], [0], [0], [0, 0, 1, 0], [], []>} : vector<17x8xbf16>, vector<17x8xbf16>, vector<17x17xf32> -> vector<17x17xf32>
    %cst_20 = arith.constant dense<0xFF800000> : vector<17xf32>
    %42 = vector.multi_reduction <maximumf>, %41, %cst_20 [1] : vector<17x17xf32> to vector<17xf32>
    %43 = vector.shape_cast %42 : vector<17xf32> to vector<17x1xf32>
    %44 = vector.broadcast %43 : vector<17x1xf32> to vector<17x17xf32>
    %45 = arith.subf %41, %44 : vector<17x17xf32>
    %46 = math.exp %45 : vector<17x17xf32>
    %cst_21 = arith.constant dense<0.000000e+00> : vector<17xf32>
    %47 = vector.multi_reduction <add>, %46, %cst_21 [1] : vector<17x17xf32> to vector<17xf32>
    %48 = vector.shape_cast %47 : vector<17xf32> to vector<17x1xf32>
    %49 = tpu.reciprocal %48 {approx = true} : vector<17x1xf32> -> vector<17x1xf32>
    %50 = arith.mulf %48, %49 : vector<17x1xf32>
    %cst_22 = arith.constant 2.000000e+00 : f32
    %51 = vector.broadcast %cst_22 : f32 to vector<17x1xf32>
    %52 = arith.subf %51, %50 : vector<17x1xf32>
    %53 = arith.mulf %49, %52 : vector<17x1xf32>
    %54 = vector.broadcast %53 : vector<17x1xf32> to vector<17x17xf32>
    %55 = arith.mulf %46, %54 : vector<17x17xf32>
    %56 = arith.truncf %55 : vector<17x17xf32> to vector<17x17xbf16>
    %57 = arith.truncf %38 : vector<17x8xf32> to vector<17x8xbf16>
    %cst_23 = arith.constant dense<0.000000e+00> : vector<17x8xf32>
    %58 = tpu.matmul %56, %57, %cst_23 {dimension_numbers = #tpu.dot_dimension_numbers<[1], [0], [0], [1], [0, 0, 1, 1], [], []>} : vector<17x17xbf16>, vector<17x8xbf16>, vector<17x8xf32> -> vector<17x8xf32>
    %59 = vector.extract_strided_slice %35 {offsets = [0, 8], sizes = [17, 8], strides = [1, 1]} : vector<17x96xf32> to vector<17x8xf32>
    %60 = vector.extract_strided_slice %35 {offsets = [0, 40], sizes = [17, 8], strides = [1, 1]} : vector<17x96xf32> to vector<17x8xf32>
    %61 = vector.extract_strided_slice %35 {offsets = [0, 72], sizes = [17, 8], strides = [1, 1]} : vector<17x96xf32> to vector<17x8xf32>
    %62 = arith.truncf %59 : vector<17x8xf32> to vector<17x8xbf16>
    %63 = arith.truncf %60 : vector<17x8xf32> to vector<17x8xbf16>
    %cst_24 = arith.constant dense<0.000000e+00> : vector<17x17xf32>
    %64 = tpu.matmul %62, %63, %cst_24 {dimension_numbers = #tpu.dot_dimension_numbers<[1], [1], [0], [0], [0, 0, 1, 0], [], []>} : vector<17x8xbf16>, vector<17x8xbf16>, vector<17x17xf32> -> vector<17x17xf32>
    %cst_25 = arith.constant dense<0xFF800000> : vector<17xf32>
    %65 = vector.multi_reduction <maximumf>, %64, %cst_25 [1] : vector<17x17xf32> to vector<17xf32>
    %66 = vector.shape_cast %65 : vector<17xf32> to vector<17x1xf32>
    %67 = vector.broadcast %66 : vector<17x1xf32> to vector<17x17xf32>
    %68 = arith.subf %64, %67 : vector<17x17xf32>
    %69 = math.exp %68 : vector<17x17xf32>
    %cst_26 = arith.constant dense<0.000000e+00> : vector<17xf32>
    %70 = vector.multi_reduction <add>, %69, %cst_26 [1] : vector<17x17xf32> to vector<17xf32>
    %71 = vector.shape_cast %70 : vector<17xf32> to vector<17x1xf32>
    %72 = tpu.reciprocal %71 {approx = true} : vector<17x1xf32> -> vector<17x1xf32>
    %73 = arith.mulf %71, %72 : vector<17x1xf32>
    %cst_27 = arith.constant 2.000000e+00 : f32
    %74 = vector.broadcast %cst_27 : f32 to vector<17x1xf32>
    %75 = arith.subf %74, %73 : vector<17x1xf32>
    %76 = arith.mulf %72, %75 : vector<17x1xf32>
    %77 = vector.broadcast %76 : vector<17x1xf32> to vector<17x17xf32>
    %78 = arith.mulf %69, %77 : vector<17x17xf32>
    %79 = arith.truncf %78 : vector<17x17xf32> to vector<17x17xbf16>
    %80 = arith.truncf %61 : vector<17x8xf32> to vector<17x8xbf16>
    %cst_28 = arith.constant dense<0.000000e+00> : vector<17x8xf32>
    %81 = tpu.matmul %79, %80, %cst_28 {dimension_numbers = #tpu.dot_dimension_numbers<[1], [0], [0], [1], [0, 0, 1, 1], [], []>} : vector<17x17xbf16>, vector<17x8xbf16>, vector<17x8xf32> -> vector<17x8xf32>
    %82 = vector.extract_strided_slice %35 {offsets = [0, 16], sizes = [17, 8], strides = [1, 1]} : vector<17x96xf32> to vector<17x8xf32>
    %83 = vector.extract_strided_slice %35 {offsets = [0, 48], sizes = [17, 8], strides = [1, 1]} : vector<17x96xf32> to vector<17x8xf32>
    %84 = vector.extract_strided_slice %35 {offsets = [0, 80], sizes = [17, 8], strides = [1, 1]} : vector<17x96xf32> to vector<17x8xf32>
    %85 = arith.truncf %82 : vector<17x8xf32> to vector<17x8xbf16>
    %86 = arith.truncf %83 : vector<17x8xf32> to vector<17x8xbf16>
    %cst_29 = arith.constant dense<0.000000e+00> : vector<17x17xf32>
    %87 = tpu.matmul %85, %86, %cst_29 {dimension_numbers = #tpu.dot_dimension_numbers<[1], [1], [0], [0], [0, 0, 1, 0], [], []>} : vector<17x8xbf16>, vector<17x8xbf16>, vector<17x17xf32> -> vector<17x17xf32>
    %cst_30 = arith.constant dense<0xFF800000> : vector<17xf32>
    %88 = vector.multi_reduction <maximumf>, %87, %cst_30 [1] : vector<17x17xf32> to vector<17xf32>
    %89 = vector.shape_cast %88 : vector<17xf32> to vector<17x1xf32>
    %90 = vector.broadcast %89 : vector<17x1xf32> to vector<17x17xf32>
    %91 = arith.subf %87, %90 : vector<17x17xf32>
    %92 = math.exp %91 : vector<17x17xf32>
    %cst_31 = arith.constant dense<0.000000e+00> : vector<17xf32>
    %93 = vector.multi_reduction <add>, %92, %cst_31 [1] : vector<17x17xf32> to vector<17xf32>
    %94 = vector.shape_cast %93 : vector<17xf32> to vector<17x1xf32>
    %95 = tpu.reciprocal %94 {approx = true} : vector<17x1xf32> -> vector<17x1xf32>
    %96 = arith.mulf %94, %95 : vector<17x1xf32>
    %cst_32 = arith.constant 2.000000e+00 : f32
    %97 = vector.broadcast %cst_32 : f32 to vector<17x1xf32>
    %98 = arith.subf %97, %96 : vector<17x1xf32>
    %99 = arith.mulf %95, %98 : vector<17x1xf32>
    %100 = vector.broadcast %99 : vector<17x1xf32> to vector<17x17xf32>
    %101 = arith.mulf %92, %100 : vector<17x17xf32>
    %102 = arith.truncf %101 : vector<17x17xf32> to vector<17x17xbf16>
    %103 = arith.truncf %84 : vector<17x8xf32> to vector<17x8xbf16>
    %cst_33 = arith.constant dense<0.000000e+00> : vector<17x8xf32>
    %104 = tpu.matmul %102, %103, %cst_33 {dimension_numbers = #tpu.dot_dimension_numbers<[1], [0], [0], [1], [0, 0, 1, 1], [], []>} : vector<17x17xbf16>, vector<17x8xbf16>, vector<17x8xf32> -> vector<17x8xf32>
    %105 = vector.extract_strided_slice %35 {offsets = [0, 24], sizes = [17, 8], strides = [1, 1]} : vector<17x96xf32> to vector<17x8xf32>
    %106 = vector.extract_strided_slice %35 {offsets = [0, 56], sizes = [17, 8], strides = [1, 1]} : vector<17x96xf32> to vector<17x8xf32>
    %107 = vector.extract_strided_slice %35 {offsets = [0, 88], sizes = [17, 8], strides = [1, 1]} : vector<17x96xf32> to vector<17x8xf32>
    %108 = arith.truncf %105 : vector<17x8xf32> to vector<17x8xbf16>
    %109 = arith.truncf %106 : vector<17x8xf32> to vector<17x8xbf16>
    %cst_34 = arith.constant dense<0.000000e+00> : vector<17x17xf32>
    %110 = tpu.matmul %108, %109, %cst_34 {dimension_numbers = #tpu.dot_dimension_numbers<[1], [1], [0], [0], [0, 0, 1, 0], [], []>} : vector<17x8xbf16>, vector<17x8xbf16>, vector<17x17xf32> -> vector<17x17xf32>
    %cst_35 = arith.constant dense<0xFF800000> : vector<17xf32>
    %111 = vector.multi_reduction <maximumf>, %110, %cst_35 [1] : vector<17x17xf32> to vector<17xf32>
    %112 = vector.shape_cast %111 : vector<17xf32> to vector<17x1xf32>
    %113 = vector.broadcast %112 : vector<17x1xf32> to vector<17x17xf32>
    %114 = arith.subf %110, %113 : vector<17x17xf32>
    %115 = math.exp %114 : vector<17x17xf32>
    %cst_36 = arith.constant dense<0.000000e+00> : vector<17xf32>
    %116 = vector.multi_reduction <add>, %115, %cst_36 [1] : vector<17x17xf32> to vector<17xf32>
    %117 = vector.shape_cast %116 : vector<17xf32> to vector<17x1xf32>
    %118 = tpu.reciprocal %117 {approx = true} : vector<17x1xf32> -> vector<17x1xf32>
    %119 = arith.mulf %117, %118 : vector<17x1xf32>
    %cst_37 = arith.constant 2.000000e+00 : f32
    %120 = vector.broadcast %cst_37 : f32 to vector<17x1xf32>
    %121 = arith.subf %120, %119 : vector<17x1xf32>
    %122 = arith.mulf %118, %121 : vector<17x1xf32>
    %123 = vector.broadcast %122 : vector<17x1xf32> to vector<17x17xf32>
    %124 = arith.mulf %115, %123 : vector<17x17xf32>
    %125 = arith.truncf %124 : vector<17x17xf32> to vector<17x17xbf16>
    %126 = arith.truncf %107 : vector<17x8xf32> to vector<17x8xbf16>
    %cst_38 = arith.constant dense<0.000000e+00> : vector<17x8xf32>
    %127 = tpu.matmul %125, %126, %cst_38 {dimension_numbers = #tpu.dot_dimension_numbers<[1], [0], [0], [1], [0, 0, 1, 1], [], []>} : vector<17x17xbf16>, vector<17x8xbf16>, vector<17x8xf32> -> vector<17x8xf32>
    %128 = tpu.concatenate %58, %81, %104, %127 in 1 : vector<17x8xf32>, vector<17x8xf32>, vector<17x8xf32>, vector<17x8xf32> -> vector<17x32xf32>
    %129 = arith.truncf %128 : vector<17x32xf32> to vector<17x32xbf16>
    %c0_39 = arith.constant 0 : index
    %c0_40 = arith.constant 0 : index
    %c0_41 = arith.constant 0 : index
    %130 = vector.load %arg9[%c0_39, %c0_40, %c0_41] : memref<1x32x32xbf16, #tpu.memory_space<vmem>>, vector<1x32x32xbf16>
    %131 = vector.shape_cast %130 : vector<1x32x32xbf16> to vector<32x32xbf16>
    %cst_42 = arith.constant dense<0.000000e+00> : vector<17x32xf32>
    %132 = tpu.matmul %129, %131, %cst_42 {dimension_numbers = #tpu.dot_dimension_numbers<[1], [0], [0], [1], [0, 0, 1, 1], [], []>} : vector<17x32xbf16>, vector<32x32xbf16>, vector<17x32xf32> -> vector<17x32xf32>
    %c0_43 = arith.constant 0 : index
    %c0_44 = arith.constant 0 : index
    %c0_45 = arith.constant 0 : index
    %133 = vector.load %arg10[%c0_43, %c0_44, %c0_45] : memref<1x1x32xf32, #tpu.memory_space<vmem>>, vector<1x1x32xf32>
    %134 = vector.shape_cast %133 : vector<1x1x32xf32> to vector<1x32xf32>
    %135 = vector.broadcast %134 : vector<1x32xf32> to vector<17x32xf32>
    %136 = arith.addf %132, %135 : vector<17x32xf32>
    %137 = arith.addf %3, %136 : vector<17x32xf32>
    %c0_46 = arith.constant 0 : index
    %c0_47 = arith.constant 0 : index
    %c0_48 = arith.constant 0 : index
    %138 = vector.load %arg13[%c0_46, %c0_47, %c0_48] : memref<1x1x32xf32, #tpu.memory_space<vmem>>, vector<1x1x32xf32>
    %139 = vector.shape_cast %138 : vector<1x1x32xf32> to vector<1x32xf32>
    %c0_49 = arith.constant 0 : index
    %c0_50 = arith.constant 0 : index
    %c0_51 = arith.constant 0 : index
    %140 = vector.load %arg14[%c0_49, %c0_50, %c0_51] : memref<1x1x32xf32, #tpu.memory_space<vmem>>, vector<1x1x32xf32>
    %141 = vector.shape_cast %140 : vector<1x1x32xf32> to vector<1x32xf32>
    %cst_52 = arith.constant dense<0.000000e+00> : vector<17xf32>
    %142 = vector.multi_reduction <add>, %137, %cst_52 [1] : vector<17x32xf32> to vector<17xf32>
    %143 = vector.shape_cast %142 : vector<17xf32> to vector<17x1xf32>
    %cst_53 = arith.constant 3.200000e+01 : f32
    %144 = vector.broadcast %cst_53 : f32 to vector<17x1xf32>
    %145 = arith.divf %143, %144 : vector<17x1xf32>
    %146 = vector.broadcast %145 : vector<17x1xf32> to vector<17x32xf32>
    %147 = arith.subf %137, %146 : vector<17x32xf32>
    %148 = arith.mulf %147, %147 : vector<17x32xf32>
    %cst_54 = arith.constant dense<0.000000e+00> : vector<17xf32>
    %149 = vector.multi_reduction <add>, %148, %cst_54 [1] : vector<17x32xf32> to vector<17xf32>
    %150 = vector.shape_cast %149 : vector<17xf32> to vector<17x1xf32>
    %cst_55 = arith.constant 3.200000e+01 : f32
    %151 = vector.broadcast %cst_55 : f32 to vector<17x1xf32>
    %152 = arith.divf %150, %151 : vector<17x1xf32>
    %cst_56 = arith.constant 9.99999974E-6 : f32
    %153 = vector.broadcast %cst_56 : f32 to vector<17x1xf32>
    %154 = arith.addf %152, %153 : vector<17x1xf32>
    %155 = math.rsqrt %154 : vector<17x1xf32>
    %156 = vector.broadcast %155 : vector<17x1xf32> to vector<17x32xf32>
    %157 = arith.mulf %147, %156 : vector<17x32xf32>
    %158 = vector.broadcast %139 : vector<1x32xf32> to vector<17x32xf32>
    %159 = arith.mulf %157, %158 : vector<17x32xf32>
    %160 = vector.broadcast %141 : vector<1x32xf32> to vector<17x32xf32>
    %161 = arith.addf %159, %160 : vector<17x32xf32>
    %162 = arith.truncf %161 : vector<17x32xf32> to vector<17x32xbf16>
    %c0_57 = arith.constant 0 : index
    %c0_58 = arith.constant 0 : index
    %c0_59 = arith.constant 0 : index
    %163 = vector.load %arg15[%c0_57, %c0_58, %c0_59] : memref<1x32x128xbf16, #tpu.memory_space<vmem>>, vector<1x32x128xbf16>
    %164 = vector.shape_cast %163 : vector<1x32x128xbf16> to vector<32x128xbf16>
    %cst_60 = arith.constant dense<0.000000e+00> : vector<17x128xf32>
    %165 = tpu.matmul %162, %164, %cst_60 {dimension_numbers = #tpu.dot_dimension_numbers<[1], [0], [0], [1], [0, 0, 1, 1], [], []>} : vector<17x32xbf16>, vector<32x128xbf16>, vector<17x128xf32> -> vector<17x128xf32>
    %c0_61 = arith.constant 0 : index
    %c0_62 = arith.constant 0 : index
    %c0_63 = arith.constant 0 : index
    %166 = vector.load %arg16[%c0_61, %c0_62, %c0_63] : memref<1x1x128xf32, #tpu.memory_space<vmem>>, vector<1x1x128xf32>
    %167 = vector.shape_cast %166 : vector<1x1x128xf32> to vector<1x128xf32>
    %168 = vector.broadcast %167 : vector<1x128xf32> to vector<17x128xf32>
    %169 = arith.addf %165, %168 : vector<17x128xf32>
    %cst_64 = arith.constant 5.000000e-01 : f32
    %170 = vector.broadcast %cst_64 : f32 to vector<17x128xf32>
    %171 = arith.mulf %170, %169 : vector<17x128xf32>
    %cst_65 = arith.constant 0.707106769 : f32
    %172 = vector.broadcast %cst_65 : f32 to vector<17x128xf32>
    %173 = arith.mulf %169, %172 : vector<17x128xf32>
    %cst_66 = arith.constant 0.000000e+00 : f32
    %174 = vector.broadcast %cst_66 : f32 to vector<17x128xf32>
    %175 = arith.cmpf oge, %173, %174 : vector<17x128xf32>
    %cst_67 = arith.constant 1.000000e+00 : f32
    %cst_68 = arith.constant -1.000000e+00 : f32
    %176 = vector.broadcast %cst_67 : f32 to vector<17x128xf32>
    %177 = vector.broadcast %cst_68 : f32 to vector<17x128xf32>
    %178 = arith.select %175, %176, %177 : vector<17x128xi1>, vector<17x128xf32>
    %179 = math.absf %173 : vector<17x128xf32>
    %cst_69 = arith.constant 0.327591091 : f32
    %180 = vector.broadcast %cst_69 : f32 to vector<17x128xf32>
    %181 = arith.mulf %180, %179 : vector<17x128xf32>
    %cst_70 = arith.constant 1.000000e+00 : f32
    %182 = vector.broadcast %cst_70 : f32 to vector<17x128xf32>
    %183 = arith.addf %182, %181 : vector<17x128xf32>
    %184 = tpu.reciprocal %183 {approx = true} : vector<17x128xf32> -> vector<17x128xf32>
    %185 = arith.mulf %183, %184 : vector<17x128xf32>
    %cst_71 = arith.constant 2.000000e+00 : f32
    %186 = vector.broadcast %cst_71 : f32 to vector<17x128xf32>
    %187 = arith.subf %186, %185 : vector<17x128xf32>
    %188 = arith.mulf %184, %187 : vector<17x128xf32>
    %cst_72 = arith.constant 1.06140542 : f32
    %189 = vector.broadcast %cst_72 : f32 to vector<17x128xf32>
    %190 = arith.mulf %189, %188 : vector<17x128xf32>
    %cst_73 = arith.constant -1.45315206 : f32
    %191 = vector.broadcast %cst_73 : f32 to vector<17x128xf32>
    %192 = arith.addf %190, %191 : vector<17x128xf32>
    %193 = arith.mulf %192, %188 : vector<17x128xf32>
    %cst_74 = arith.constant 1.42141378 : f32
    %194 = vector.broadcast %cst_74 : f32 to vector<17x128xf32>
    %195 = arith.addf %193, %194 : vector<17x128xf32>
    %196 = arith.mulf %195, %188 : vector<17x128xf32>
    %cst_75 = arith.constant -0.284496725 : f32
    %197 = vector.broadcast %cst_75 : f32 to vector<17x128xf32>
    %198 = arith.addf %196, %197 : vector<17x128xf32>
    %199 = arith.mulf %198, %188 : vector<17x128xf32>
    %cst_76 = arith.constant 0.254829586 : f32
    %200 = vector.broadcast %cst_76 : f32 to vector<17x128xf32>
    %201 = arith.addf %199, %200 : vector<17x128xf32>
    %202 = arith.mulf %201, %188 : vector<17x128xf32>
    %cst_77 = arith.constant 0.000000e+00 : f32
    %203 = vector.broadcast %cst_77 : f32 to vector<17x128xf32>
    %204 = arith.subf %203, %179 : vector<17x128xf32>
    %205 = arith.mulf %204, %179 : vector<17x128xf32>
    %206 = math.exp %205 : vector<17x128xf32>
    %207 = arith.mulf %202, %206 : vector<17x128xf32>
    %cst_78 = arith.constant 1.000000e+00 : f32
    %208 = vector.broadcast %cst_78 : f32 to vector<17x128xf32>
    %209 = arith.subf %208, %207 : vector<17x128xf32>
    %210 = arith.mulf %178, %209 : vector<17x128xf32>
    %cst_79 = arith.constant 1.000000e+00 : f32
    %211 = vector.broadcast %cst_79 : f32 to vector<17x128xf32>
    %212 = arith.addf %211, %210 : vector<17x128xf32>
    %213 = arith.mulf %171, %212 : vector<17x128xf32>
    %214 = arith.truncf %213 : vector<17x128xf32> to vector<17x128xbf16>
    %c0_80 = arith.constant 0 : index
    %c0_81 = arith.constant 0 : index
    %c0_82 = arith.constant 0 : index
    %215 = vector.load %arg17[%c0_80, %c0_81, %c0_82] : memref<1x128x32xbf16, #tpu.memory_space<vmem>>, vector<1x128x32xbf16>
    %216 = vector.shape_cast %215 : vector<1x128x32xbf16> to vector<128x32xbf16>
    %cst_83 = arith.constant dense<0.000000e+00> : vector<17x32xf32>
    %217 = tpu.matmul %214, %216, %cst_83 {dimension_numbers = #tpu.dot_dimension_numbers<[1], [0], [0], [1], [0, 0, 1, 1], [], []>} : vector<17x128xbf16>, vector<128x32xbf16>, vector<17x32xf32> -> vector<17x32xf32>
    %c0_84 = arith.constant 0 : index
    %c0_85 = arith.constant 0 : index
    %c0_86 = arith.constant 0 : index
    %218 = vector.load %arg18[%c0_84, %c0_85, %c0_86] : memref<1x1x32xf32, #tpu.memory_space<vmem>>, vector<1x1x32xf32>
    %219 = vector.shape_cast %218 : vector<1x1x32xf32> to vector<1x32xf32>
    %220 = vector.broadcast %219 : vector<1x32xf32> to vector<17x32xf32>
    %221 = arith.addf %217, %220 : vector<17x32xf32>
    %222 = arith.addf %137, %221 : vector<17x32xf32>
    %c0_87 = arith.constant 0 : index
    %c0_88 = arith.constant 0 : index
    %223 = vector.load %arg20[%c0_87, %c0_88] : memref<17x32xf32, #tpu.memory_space<vmem>>, vector<17x32xf32>
    tpu.vector_store %arg20[%c0_87, %c0_88], %222 {strides = array<i32>} : memref<17x32xf32, #tpu.memory_space<vmem>>, vector<17x32xf32>,
    %c1_i32 = arith.constant 1 : i32
    %224 = arith.cmpi eq, %arg1, %c1_i32 : i32
    %225 = arith.extui %224 : i1 to i32
    %c0_i32_89 = arith.constant 0 : i32
    %226 = arith.cmpi ne, %225, %c0_i32_89 : i32
    scf.if %226 {
      %cst_90 = arith.constant dense<0.000000e+00> : vector<32xf32>
      %227 = vector.multi_reduction <add>, %222, %cst_90 [0] : vector<17x32xf32> to vector<32xf32>
      %228 = vector.shape_cast %227 : vector<32xf32> to vector<1x32xf32>
      %cst_91 = arith.constant 0.0588235296 : f32
      %229 = vector.broadcast %cst_91 : f32 to vector<1x32xf32>
      %230 = arith.mulf %228, %229 : vector<1x32xf32>
      %231 = vector.shape_cast %230 : vector<1x32xf32> to vector<1x1x32xf32>
      %c0_92 = arith.constant 0 : index
      %c0_93 = arith.constant 0 : index
      %c0_94 = arith.constant 0 : index
      %232 = vector.load %arg19[%c0_92, %c0_93, %c0_94] : memref<1x1x32xf32, #tpu.memory_space<vmem>>, vector<1x1x32xf32>
      tpu.vector_store %arg19[%c0_92, %c0_93, %c0_94], %231 {strides = array<i32>} : memref<1x1x32xf32, #tpu.memory_space<vmem>>, vector<1x1x32xf32>,
    } else {
    }
    return
  }
  func.func @transform_0(%arg0: i32, %arg1: i32) -> (i32, i32, i32) {
    %c0_i32 = arith.constant 0 : i32
    %c0_i32_0 = arith.constant 0 : i32
    %c0_i32_1 = arith.constant 0 : i32
    return %arg0, %c0_i32, %c0_i32_0 : i32, i32, i32
  }
  func.func @transform_1(%arg0: i32, %arg1: i32) -> (i32, i32) {
    %c0_i32 = arith.constant 0 : i32
    %c0_i32_0 = arith.constant 0 : i32
    %c0_i32_1 = arith.constant 0 : i32
    return %c0_i32, %c0_i32_0 : i32, i32
  }
  func.func @transform_2(%arg0: i32, %arg1: i32) -> (i32, i32) {
    %c0_i32 = arith.constant 0 : i32
    %c0_i32_0 = arith.constant 0 : i32
    %c0_i32_1 = arith.constant 0 : i32
    return %c0_i32, %c0_i32_0 : i32, i32
  }
  func.func @transform_3(%arg0: i32, %arg1: i32) -> (i32, i32) {
    %c0_i32 = arith.constant 0 : i32
    %c0_i32_0 = arith.constant 0 : i32
    %c0_i32_1 = arith.constant 0 : i32
    return %c0_i32, %c0_i32_0 : i32, i32
  }
  func.func @transform_4(%arg0: i32, %arg1: i32) -> (i32, i32) {
    %c0_i32 = arith.constant 0 : i32
    %c0_i32_0 = arith.constant 0 : i32
    %c0_i32_1 = arith.constant 0 : i32
    return %c0_i32, %c0_i32_0 : i32, i32
  }
  func.func @transform_5(%arg0: i32, %arg1: i32) -> (i32, i32, i32) {
    %c0_i32 = arith.constant 0 : i32
    %c0_i32_0 = arith.constant 0 : i32
    %c0_i32_1 = arith.constant 0 : i32
    return %arg1, %c0_i32, %c0_i32_0 : i32, i32, i32
  }
  func.func @transform_6(%arg0: i32, %arg1: i32) -> (i32, i32, i32) {
    %c0_i32 = arith.constant 0 : i32
    %c0_i32_0 = arith.constant 0 : i32
    %c0_i32_1 = arith.constant 0 : i32
    return %arg1, %c0_i32, %c0_i32_0 : i32, i32, i32
  }
  func.func @transform_7(%arg0: i32, %arg1: i32) -> (i32, i32, i32) {
    %c0_i32 = arith.constant 0 : i32
    %c0_i32_0 = arith.constant 0 : i32
    %c0_i32_1 = arith.constant 0 : i32
    return %arg1, %c0_i32, %c0_i32_0 : i32, i32, i32
  }
  func.func @transform_8(%arg0: i32, %arg1: i32) -> (i32, i32, i32) {
    %c0_i32 = arith.constant 0 : i32
    %c0_i32_0 = arith.constant 0 : i32
    %c0_i32_1 = arith.constant 0 : i32
    return %arg1, %c0_i32, %c0_i32_0 : i32, i32, i32
  }
  func.func @transform_9(%arg0: i32, %arg1: i32) -> (i32, i32, i32) {
    %c0_i32 = arith.constant 0 : i32
    %c0_i32_0 = arith.constant 0 : i32
    %c0_i32_1 = arith.constant 0 : i32
    return %arg1, %c0_i32, %c0_i32_0 : i32, i32, i32
  }
  func.func @transform_10(%arg0: i32, %arg1: i32) -> (i32, i32, i32) {
    %c0_i32 = arith.constant 0 : i32
    %c0_i32_0 = arith.constant 0 : i32
    %c0_i32_1 = arith.constant 0 : i32
    return %arg1, %c0_i32, %c0_i32_0 : i32, i32, i32
  }
  func.func @transform_11(%arg0: i32, %arg1: i32) -> (i32, i32, i32) {
    %c0_i32 = arith.constant 0 : i32
    %c0_i32_0 = arith.constant 0 : i32
    %c0_i32_1 = arith.constant 0 : i32
    return %arg1, %c0_i32, %c0_i32_0 : i32, i32, i32
  }
  func.func @transform_12(%arg0: i32, %arg1: i32) -> (i32, i32, i32) {
    %c0_i32 = arith.constant 0 : i32
    %c0_i32_0 = arith.constant 0 : i32
    %c0_i32_1 = arith.constant 0 : i32
    return %arg1, %c0_i32, %c0_i32_0 : i32, i32, i32
  }
  func.func @transform_13(%arg0: i32, %arg1: i32) -> (i32, i32, i32) {
    %c0_i32 = arith.constant 0 : i32
    %c0_i32_0 = arith.constant 0 : i32
    %c0_i32_1 = arith.constant 0 : i32
    return %arg1, %c0_i32, %c0_i32_0 : i32, i32, i32
  }
  func.func @transform_14(%arg0: i32, %arg1: i32) -> (i32, i32, i32) {
    %c0_i32 = arith.constant 0 : i32
    %c0_i32_0 = arith.constant 0 : i32
    %c0_i32_1 = arith.constant 0 : i32
    return %arg1, %c0_i32, %c0_i32_0 : i32, i32, i32
  }
  func.func @transform_15(%arg0: i32, %arg1: i32) -> (i32, i32, i32) {
    %c0_i32 = arith.constant 0 : i32
    %c0_i32_0 = arith.constant 0 : i32
    %c0_i32_1 = arith.constant 0 : i32
    return %arg1, %c0_i32, %c0_i32_0 : i32, i32, i32
  }
  func.func @transform_16(%arg0: i32, %arg1: i32) -> (i32, i32, i32) {
    %c0_i32 = arith.constant 0 : i32
    %c0_i32_0 = arith.constant 0 : i32
    %c0_i32_1 = arith.constant 0 : i32
    return %arg1, %c0_i32, %c0_i32_0 : i32, i32, i32
  }
  func.func @transform_17(%arg0: i32, %arg1: i32) -> (i32, i32, i32) {
    %c0_i32 = arith.constant 0 : i32
    %c0_i32_0 = arith.constant 0 : i32
    %c0_i32_1 = arith.constant 0 : i32
    return %arg0, %c0_i32, %c0_i32_0 : i32, i32, i32
  }
}

</mosaic_0001>

<llo_original>
// kernel: clip_vision_encoder_forward.1
$region0: #{clip_vision_encoder_forward.1}
  #allocation0 [shape = 'u32[]', space=smem, size = 0x4, offset = 0x4, fixed_abs, tag = 'smem constant byte address 0x4 - core index']
  #allocation1 [shape = 'u32[144,128]{1,0:T(1,128)}', space=vmem, size = 0x12000, scoped, tag = 'internal scratch']
  #allocation2 [shape = 'f32[17,32]{1,0:T(8,128)}', space=vmem, size = 0x3000, scoped, tag = 'scratch operand']
  %s0 = inlined_call_operand.vmem [shape: f32[2,17,48], index: 0, kind: input, shape index: {}]
  %s1 = inlined_call_operand.vmem [shape: bf16[48,32], index: 1, kind: input, shape index: {}]
  %s2 = inlined_call_operand.vmem [shape: f32[17,32], index: 2, kind: input, shape index: {}]
  %s3 = inlined_call_operand.vmem [shape: f32[1,32], index: 3, kind: input, shape index: {}]
  %s4 = inlined_call_operand.vmem [shape: f32[1,32], index: 4, kind: input, shape index: {}]
  %s5 = inlined_call_operand.vmem [shape: bf16[2,32,96], index: 5, kind: input, shape index: {}]
  %s6 = inlined_call_operand.vmem [shape: f32[2,1,96], index: 6, kind: input, shape index: {}]
  %s7 = inlined_call_operand.vmem [shape: bf16[2,32,32], index: 7, kind: input, shape index: {}]
  %s8 = inlined_call_operand.vmem [shape: f32[2,1,32], index: 8, kind: input, shape index: {}]
  %s9 = inlined_call_operand.vmem [shape: f32[2,1,32], index: 9, kind: input, shape index: {}]
  %s10 = inlined_call_operand.vmem [shape: f32[2,1,32], index: 10, kind: input, shape index: {}]
  %s11 = inlined_call_operand.vmem [shape: f32[2,1,32], index: 11, kind: input, shape index: {}]
  %s12 = inlined_call_operand.vmem [shape: f32[2,1,32], index: 12, kind: input, shape index: {}]
  %s13 = inlined_call_operand.vmem [shape: bf16[2,32,128], index: 13, kind: input, shape index: {}]
  %s14 = inlined_call_operand.vmem [shape: f32[2,1,128], index: 14, kind: input, shape index: {}]
  %s15 = inlined_call_operand.vmem [shape: bf16[2,128,32], index: 15, kind: input, shape index: {}]
  %s16 = inlined_call_operand.vmem [shape: f32[2,1,32], index: 16, kind: input, shape index: {}]
  %s17 = inlined_call_operand.hbm [shape: f32[2,1,32], index: 17, kind: output, shape index: {}]
  %s18 = sld [smem:[#allocation0]]
  $region109: #{clip_vision_encoder_forward.1} parent=0
    _
  %s20 = ssub.s32 1, %s18
  %s21 = scalar_select 0, %s20, %s18
  $region1: #{clip_vision_encoder_forward.1} parent=0
    #allocation3 [shape = 'u8[1024]{0}', space=vmem, size = 0x400, scoped, tag = 'output window, operand 0']
    #allocation4 [shape = 's32[2]{0}', space=sflag, size = 0x8, scoped, tag = 'scoped memory for clip_vision_encoder_forward.1']
    %22 = vsyncpa [#allocation4], 0
    %s23 = scalar_lea.sflag [#allocation4], 1
    %24 = vsyncpa %s23, 0
    loop: start=0, step=1, limit=6
    $region2: #{clip_vision_encoder_forward.1} parent=1 // loop_pre_header
      _
    $region3: #{clip_vision_encoder_forward.1} parent=1 // loop_header
      %s26 = sphi 0, %s30
      %p27 = scmp.ge.s32.totalorder %s26, 6
      %s33 = sphi 0, %s45
      %s34 = sphi 0, %s41
      %s35 = sphi 0, %s33
      %s36 = sphi 0, %s34
      %s37 = sphi 0, %s35
      %s38 = sphi 0, %s36
      %s48 = sphi 0, %s50
      %s51 = sphi 0, %s48
      %s52 = sphi 0, %s51
      %s68 = sphi 0, %s52
      %s72 = sphi 0, %s72
      %s74 = sphi 0, %s72
      %s75 = sphi 0, %s74
      %s89 = sphi 0, %s75
      %s93 = sphi 0, %s93
      %s95 = sphi 0, %s93
      %s96 = sphi 0, %s95
      %s110 = sphi 0, %s96
      %s114 = sphi 0, %s114
      %s116 = sphi 0, %s114
      %s117 = sphi 0, %s116
      %s131 = sphi 0, %s117
      %s135 = sphi 0, %s135
      %s137 = sphi 0, %s135
      %s138 = sphi 0, %s137
      %s152 = sphi 0, %s138
      %s158 = sphi 0, %s160
      %s161 = sphi 0, %s158
      %s162 = sphi 0, %s161
      %s178 = sphi 0, %s162
      %s184 = sphi 0, %s186
      %s187 = sphi 0, %s184
      %s188 = sphi 0, %s187
      %s204 = sphi 0, %s188
      %s210 = sphi 0, %s212
      %s213 = sphi 0, %s210
      %s214 = sphi 0, %s213
      %s230 = sphi 0, %s214
      %s236 = sphi 0, %s238
      %s239 = sphi 0, %s236
      %s240 = sphi 0, %s239
      %s256 = sphi 0, %s240
      %s262 = sphi 0, %s264
      %s265 = sphi 0, %s262
      %s266 = sphi 0, %s265
      %s282 = sphi 0, %s266
      %s288 = sphi 0, %s290
      %s291 = sphi 0, %s288
      %s292 = sphi 0, %s291
      %s308 = sphi 0, %s292
      %s314 = sphi 0, %s316
      %s317 = sphi 0, %s314
      %s318 = sphi 0, %s317
      %s334 = sphi 0, %s318
      %s340 = sphi 0, %s342
      %s343 = sphi 0, %s340
      %s344 = sphi 0, %s343
      %s360 = sphi 0, %s344
      %s366 = sphi 0, %s368
      %s369 = sphi 0, %s366
      %s370 = sphi 0, %s369
      %s386 = sphi 0, %s370
      %s392 = sphi 0, %s394
      %s395 = sphi 0, %s392
      %s396 = sphi 0, %s395
      %s412 = sphi 0, %s396
      %s418 = sphi 0, %s420
      %s421 = sphi 0, %s418
      %s422 = sphi 0, %s421
      %s438 = sphi 0, %s422
      %s444 = sphi 0, %s446
      %s447 = sphi 0, %s444
      %s448 = sphi 0, %s447
      %s464 = sphi 0, %s448
      %s470 = sphi 0, %s472
      %s473 = sphi 0, %s470
      %s474 = sphi 0, %s473
      %s490 = sphi 0, %s474
    $region4: #{clip_vision_encoder_forward.1} parent=1 // loop_header_branch
      %29 = sbr.rel (%p27) target = $region8
    $region5: #{clip_vision_encoder_forward.1} parent=1 // loop_body
      %s31 = ssub.s32 %s26, 1
      %s32 = ssub.s32 %s26, 2
      %s39 = sadd.s32 1, %s34
      %p40 = scmp.ge.s32.totalorder %s39, 2
      %s41 = scalar_select %p40, 0, %s39
      %s42 = sadd.s32 1, %s33
      %s43 = scalar_select %p40, %s42, %s33
      %p44 = scmp.ge.s32.totalorder %s43, 2
      %s45 = scalar_select %p44, 0, %s43
      %s46 = ssub.s32 %s33, %s45
      %p47 = scmp.eq.s32.totalorder %s46, 0
      %s49 = sadd.s32 %s48, 1
      %s50 = scalar_select %p47, %s48, %s49
      %p53 = pneg %p47
      %p54 = scmp.eq.s32.totalorder %s26, 3
      %p55 = por %p53, %p54
      %p56 = scmp.ne.s32.totalorder %s48, %s51
      %p57 = scmp.eq.s32.totalorder %s26, 0
      %p58 = por %p56, %p57
      %p59 = scmp.ne.s32.totalorder %s48, %s51
      %p60 = scmp.eq.s32.totalorder %s31, 3
      %p61 = por %p59, %p60
      %p62 = scmp.ne.s32.totalorder %s51, %s52
      %p63 = scmp.eq.s32.totalorder %s31, 0
      %p64 = por %p62, %p63
      %p65 = scmp.ne.s32.totalorder %s51, %s52
      %p66 = scmp.eq.s32.totalorder %s32, 3
      %p67 = por %p65, %p66
      %p69 = scmp.ne.s32.totalorder %s52, %s68
      %p70 = scmp.eq.s32.totalorder %s32, 0
      %p71 = por %p69, %p70
      %s73 = sadd.s32 %s72, 1
      %p76 = scmp.eq.s32.totalorder %s26, 3
      %p77 = scmp.ne.s32.totalorder %s72, %s74
      %p78 = scmp.eq.s32.totalorder %s26, 0
      %p79 = por %p77, %p78
      %p80 = scmp.ne.s32.totalorder %s72, %s74
      %p81 = scmp.eq.s32.totalorder %s31, 3
      %p82 = por %p80, %p81
      %p83 = scmp.ne.s32.totalorder %s74, %s75
      %p84 = scmp.eq.s32.totalorder %s31, 0
      %p85 = por %p83, %p84
      %p86 = scmp.ne.s32.totalorder %s74, %s75
      %p87 = scmp.eq.s32.totalorder %s32, 3
      %p88 = por %p86, %p87
      %p90 = scmp.ne.s32.totalorder %s75, %s89
      %p91 = scmp.eq.s32.totalorder %s32, 0
      %p92 = por %p90, %p91
      %s94 = sadd.s32 %s93, 1
      %p97 = scmp.eq.s32.totalorder %s26, 3
      %p98 = scmp.ne.s32.totalorder %s93, %s95
      %p99 = scmp.eq.s32.totalorder %s26, 0
      %p100 = por %p98, %p99
      %p101 = scmp.ne.s32.totalorder %s93, %s95
      %p102 = scmp.eq.s32.totalorder %s31, 3
      %p103 = por %p101, %p102
      %p104 = scmp.ne.s32.totalorder %s95, %s96
      %p105 = scmp.eq.s32.totalorder %s31, 0
      %p106 = por %p104, %p105
      %p107 = scmp.ne.s32.totalorder %s95, %s96
      %p108 = scmp.eq.s32.totalorder %s32, 3
      %p109 = por %p107, %p108
      %p111 = scmp.ne.s32.totalorder %s96, %s110
      %p112 = scmp.eq.s32.totalorder %s32, 0
      %p113 = por %p111, %p112
      %s115 = sadd.s32 %s114, 1
      %p118 = scmp.eq.s32.totalorder %s26, 3
      %p119 = scmp.ne.s32.totalorder %s114, %s116
      %p120 = scmp.eq.s32.totalorder %s26, 0
      %p121 = por %p119, %p120
      %p122 = scmp.ne.s32.totalorder %s114, %s116
      %p123 = scmp.eq.s32.totalorder %s31, 3
      %p124 = por %p122, %p123
      %p125 = scmp.ne.s32.totalorder %s116, %s117
      %p126 = scmp.eq.s32.totalorder %s31, 0
      %p127 = por %p125, %p126
      %p128 = scmp.ne.s32.totalorder %s116, %s117
      %p129 = scmp.eq.s32.totalorder %s32, 3
      %p130 = por %p128, %p129
      %p132 = scmp.ne.s32.totalorder %s117, %s131
      %p133 = scmp.eq.s32.totalorder %s32, 0
      %p134 = por %p132, %p133
      %s136 = sadd.s32 %s135, 1
      %p139 = scmp.eq.s32.totalorder %s26, 3
      %p140 = scmp.ne.s32.totalorder %s135, %s137
      %p141 = scmp.eq.s32.totalorder %s26, 0
      %p142 = por %p140, %p141
      %p143 = scmp.ne.s32.totalorder %s135, %s137
      %p144 = scmp.eq.s32.totalorder %s31, 3
      %p145 = por %p143, %p144
      %p146 = scmp.ne.s32.totalorder %s137, %s138
      %p147 = scmp.eq.s32.totalorder %s31, 0
      %p148 = por %p146, %p147
      %p149 = scmp.ne.s32.totalorder %s137, %s138
      %p150 = scmp.eq.s32.totalorder %s32, 3
      %p151 = por %p149, %p150
      %p153 = scmp.ne.s32.totalorder %s138, %s152
      %p154 = scmp.eq.s32.totalorder %s32, 0
      %p155 = por %p153, %p154
      %s156 = ssub.s32 %s34, %s41
      %p157 = scmp.eq.s32.totalorder %s156, 0
      %s159 = sadd.s32 %s158, 1
      %s160 = scalar_select %p157, %s158, %s159
      %p163 = pneg %p157
      %p164 = scmp.eq.s32.totalorder %s26, 3
      %p165 = por %p163, %p164
      %p166 = scmp.ne.s32.totalorder %s158, %s161
      %p167 = scmp.eq.s32.totalorder %s26, 0
      %p168 = por %p166, %p167
      %p169 = scmp.ne.s32.totalorder %s158, %s161
      %p170 = scmp.eq.s32.totalorder %s31, 3
      %p171 = por %p169, %p170
      %p172 = scmp.ne.s32.totalorder %s161, %s162
      %p173 = scmp.eq.s32.totalorder %s31, 0
      %p174 = por %p172, %p173
      %p175 = scmp.ne.s32.totalorder %s161, %s162
      %p176 = scmp.eq.s32.totalorder %s32, 3
      %p177 = por %p175, %p176
      %p179 = scmp.ne.s32.totalorder %s162, %s178
      %p180 = scmp.eq.s32.totalorder %s32, 0
      %p181 = por %p179, %p180
      %s182 = ssub.s32 %s34, %s41
      %p183 = scmp.eq.s32.totalorder %s182, 0
      %s185 = sadd.s32 %s184, 1
      %s186 = scalar_select %p183, %s184, %s185
      %p189 = pneg %p183
      %p190 = scmp.eq.s32.totalorder %s26, 3
      %p191 = por %p189, %p190
      %p192 = scmp.ne.s32.totalorder %s184, %s187
      %p193 = scmp.eq.s32.totalorder %s26, 0
      %p194 = por %p192, %p193
      %p195 = scmp.ne.s32.totalorder %s184, %s187
      %p196 = scmp.eq.s32.totalorder %s31, 3
      %p197 = por %p195, %p196
      %p198 = scmp.ne.s32.totalorder %s187, %s188
      %p199 = scmp.eq.s32.totalorder %s31, 0
      %p200 = por %p198, %p199
      %p201 = scmp.ne.s32.totalorder %s187, %s188
      %p202 = scmp.eq.s32.totalorder %s32, 3
      %p203 = por %p201, %p202
      %p205 = scmp.ne.s32.totalorder %s188, %s204
      %p206 = scmp.eq.s32.totalorder %s32, 0
      %p207 = por %p205, %p206
      %s208 = ssub.s32 %s34, %s41
      %p209 = scmp.eq.s32.totalorder %s208, 0
      %s211 = sadd.s32 %s210, 1
      %s212 = scalar_select %p209, %s210, %s211
      %p215 = pneg %p209
      %p216 = scmp.eq.s32.totalorder %s26, 3
      %p217 = por %p215, %p216
      %p218 = scmp.ne.s32.totalorder %s210, %s213
      %p219 = scmp.eq.s32.totalorder %s26, 0
      %p220 = por %p218, %p219
      %p221 = scmp.ne.s32.totalorder %s210, %s213
      %p222 = scmp.eq.s32.totalorder %s31, 3
      %p223 = por %p221, %p222
      %p224 = scmp.ne.s32.totalorder %s213, %s214
      %p225 = scmp.eq.s32.totalorder %s31, 0
      %p226 = por %p224, %p225
      %p227 = scmp.ne.s32.totalorder %s213, %s214
      %p228 = scmp.eq.s32.totalorder %s32, 3
      %p229 = por %p227, %p228
      %p231 = scmp.ne.s32.totalorder %s214, %s230
      %p232 = scmp.eq.s32.totalorder %s32, 0
      %p233 = por %p231, %p232
      %s234 = ssub.s32 %s34, %s41
      %p235 = scmp.eq.s32.totalorder %s234, 0
      %s237 = sadd.s32 %s236, 1
      %s238 = scalar_select %p235, %s236, %s237
      %p241 = pneg %p235
      %p242 = scmp.eq.s32.totalorder %s26, 3
      %p243 = por %p241, %p242
      %p244 = scmp.ne.s32.totalorder %s236, %s239
      %p245 = scmp.eq.s32.totalorder %s26, 0
      %p246 = por %p244, %p245
      %p247 = scmp.ne.s32.totalorder %s236, %s239
      %p248 = scmp.eq.s32.totalorder %s31, 3
      %p249 = por %p247, %p248
      %p250 = scmp.ne.s32.totalorder %s239, %s240
      %p251 = scmp.eq.s32.totalorder %s31, 0
      %p252 = por %p250, %p251
      %p253 = scmp.ne.s32.totalorder %s239, %s240
      %p254 = scmp.eq.s32.totalorder %s32, 3
      %p255 = por %p253, %p254
      %p257 = scmp.ne.s32.totalorder %s240, %s256
      %p258 = scmp.eq.s32.totalorder %s32, 0
      %p259 = por %p257, %p258
      %s260 = ssub.s32 %s34, %s41
      %p261 = scmp.eq.s32.totalorder %s260, 0
      %s263 = sadd.s32 %s262, 1
      %s264 = scalar_select %p261, %s262, %s263
      %p267 = pneg %p261
      %p268 = scmp.eq.s32.totalorder %s26, 3
      %p269 = por %p267, %p268
      %p270 = scmp.ne.s32.totalorder %s262, %s265
      %p271 = scmp.eq.s32.totalorder %s26, 0
      %p272 = por %p270, %p271
      %p273 = scmp.ne.s32.totalorder %s262, %s265
      %p274 = scmp.eq.s32.totalorder %s31, 3
      %p275 = por %p273, %p274
      %p276 = scmp.ne.s32.totalorder %s265, %s266
      %p277 = scmp.eq.s32.totalorder %s31, 0
      %p278 = por %p276, %p277
      %p279 = scmp.ne.s32.totalorder %s265, %s266
      %p280 = scmp.eq.s32.totalorder %s32, 3
      %p281 = por %p279, %p280
      %p283 = scmp.ne.s32.totalorder %s266, %s282
      %p284 = scmp.eq.s32.totalorder %s32, 0
      %p285 = por %p283, %p284
      %s286 = ssub.s32 %s34, %s41
      %p287 = scmp.eq.s32.totalorder %s286, 0
      %s289 = sadd.s32 %s288, 1
      %s290 = scalar_select %p287, %s288, %s289
      %p293 = pneg %p287
      %p294 = scmp.eq.s32.totalorder %s26, 3
      %p295 = por %p293, %p294
      %p296 = scmp.ne.s32.totalorder %s288, %s291
      %p297 = scmp.eq.s32.totalorder %s26, 0
      %p298 = por %p296, %p297
      %p299 = scmp.ne.s32.totalorder %s288, %s291
      %p300 = scmp.eq.s32.totalorder %s31, 3
      %p301 = por %p299, %p300
      %p302 = scmp.ne.s32.totalorder %s291, %s292
      %p303 = scmp.eq.s32.totalorder %s31, 0
      %p304 = por %p302, %p303
      %p305 = scmp.ne.s32.totalorder %s291, %s292
      %p306 = scmp.eq.s32.totalorder %s32, 3
      %p307 = por %p305, %p306
      %p309 = scmp.ne.s32.totalorder %s292, %s308
      %p310 = scmp.eq.s32.totalorder %s32, 0
      %p311 = por %p309, %p310
      %s312 = ssub.s32 %s34, %s41
      %p313 = scmp.eq.s32.totalorder %s312, 0
      %s315 = sadd.s32 %s314, 1
      %s316 = scalar_select %p313, %s314, %s315
      %p319 = pneg %p313
      %p320 = scmp.eq.s32.totalorder %s26, 3
      %p321 = por %p319, %p320
      %p322 = scmp.ne.s32.totalorder %s314, %s317
      %p323 = scmp.eq.s32.totalorder %s26, 0
      %p324 = por %p322, %p323
      %p325 = scmp.ne.s32.totalorder %s314, %s317
      %p326 = scmp.eq.s32.totalorder %s31, 3
      %p327 = por %p325, %p326
      %p328 = scmp.ne.s32.totalorder %s317, %s318
      %p329 = scmp.eq.s32.totalorder %s31, 0
      %p330 = por %p328, %p329
      %p331 = scmp.ne.s32.totalorder %s317, %s318
      %p332 = scmp.eq.s32.totalorder %s32, 3
      %p333 = por %p331, %p332
      %p335 = scmp.ne.s32.totalorder %s318, %s334
      %p336 = scmp.eq.s32.totalorder %s32, 0
      %p337 = por %p335, %p336
      %s338 = ssub.s32 %s34, %s41
      %p339 = scmp.eq.s32.totalorder %s338, 0
      %s341 = sadd.s32 %s340, 1
      %s342 = scalar_select %p339, %s340, %s341
      %p345 = pneg %p339
      %p346 = scmp.eq.s32.totalorder %s26, 3
      %p347 = por %p345, %p346
      %p348 = scmp.ne.s32.totalorder %s340, %s343
      %p349 = scmp.eq.s32.totalorder %s26, 0
      %p350 = por %p348, %p349
      %p351 = scmp.ne.s32.totalorder %s340, %s343
      %p352 = scmp.eq.s32.totalorder %s31, 3
      %p353 = por %p351, %p352
      %p354 = scmp.ne.s32.totalorder %s343, %s344
      %p355 = scmp.eq.s32.totalorder %s31, 0
      %p356 = por %p354, %p355
      %p357 = scmp.ne.s32.totalorder %s343, %s344
      %p358 = scmp.eq.s32.totalorder %s32, 3
      %p359 = por %p357, %p358
      %p361 = scmp.ne.s32.totalorder %s344, %s360
      %p362 = scmp.eq.s32.totalorder %s32, 0
      %p363 = por %p361, %p362
      %s364 = ssub.s32 %s34, %s41
      %p365 = scmp.eq.s32.totalorder %s364, 0
      %s367 = sadd.s32 %s366, 1
      %s368 = scalar_select %p365, %s366, %s367
      %p371 = pneg %p365
      %p372 = scmp.eq.s32.totalorder %s26, 3
      %p373 = por %p371, %p372
      %p374 = scmp.ne.s32.totalorder %s366, %s369
      %p375 = scmp.eq.s32.totalorder %s26, 0
      %p376 = por %p374, %p375
      %p377 = scmp.ne.s32.totalorder %s366, %s369
      %p378 = scmp.eq.s32.totalorder %s31, 3
      %p379 = por %p377, %p378
      %p380 = scmp.ne.s32.totalorder %s369, %s370
      %p381 = scmp.eq.s32.totalorder %s31, 0
      %p382 = por %p380, %p381
      %p383 = scmp.ne.s32.totalorder %s369, %s370
      %p384 = scmp.eq.s32.totalorder %s32, 3
      %p385 = por %p383, %p384
      %p387 = scmp.ne.s32.totalorder %s370, %s386
      %p388 = scmp.eq.s32.totalorder %s32, 0
      %p389 = por %p387, %p388
      %s390 = ssub.s32 %s34, %s41
      %p391 = scmp.eq.s32.totalorder %s390, 0
      %s393 = sadd.s32 %s392, 1
      %s394 = scalar_select %p391, %s392, %s393
      %p397 = pneg %p391
      %p398 = scmp.eq.s32.totalorder %s26, 3
      %p399 = por %p397, %p398
      %p400 = scmp.ne.s32.totalorder %s392, %s395
      %p401 = scmp.eq.s32.totalorder %s26, 0
      %p402 = por %p400, %p401
      %p403 = scmp.ne.s32.totalorder %s392, %s395
      %p404 = scmp.eq.s32.totalorder %s31, 3
      %p405 = por %p403, %p404
      %p406 = scmp.ne.s32.totalorder %s395, %s396
      %p407 = scmp.eq.s32.totalorder %s31, 0
      %p408 = por %p406, %p407
      %p409 = scmp.ne.s32.totalorder %s395, %s396
      %p410 = scmp.eq.s32.totalorder %s32, 3
      %p411 = por %p409, %p410
      %p413 = scmp.ne.s32.totalorder %s396, %s412
      %p414 = scmp.eq.s32.totalorder %s32, 0
      %p415 = por %p413, %p414
      %s416 = ssub.s32 %s34, %s41
      %p417 = scmp.eq.s32.totalorder %s416, 0
      %s419 = sadd.s32 %s418, 1
      %s420 = scalar_select %p417, %s418, %s419
      %p423 = pneg %p417
      %p424 = scmp.eq.s32.totalorder %s26, 3
      %p425 = por %p423, %p424
      %p426 = scmp.ne.s32.totalorder %s418, %s421
      %p427 = scmp.eq.s32.totalorder %s26, 0
      %p428 = por %p426, %p427
      %p429 = scmp.ne.s32.totalorder %s418, %s421
      %p430 = scmp.eq.s32.totalorder %s31, 3
      %p431 = por %p429, %p430
      %p432 = scmp.ne.s32.totalorder %s421, %s422
      %p433 = scmp.eq.s32.totalorder %s31, 0
      %p434 = por %p432, %p433
      %p435 = scmp.ne.s32.totalorder %s421, %s422
      %p436 = scmp.eq.s32.totalorder %s32, 3
      %p437 = por %p435, %p436
      %p439 = scmp.ne.s32.totalorder %s422, %s438
      %p440 = scmp.eq.s32.totalorder %s32, 0
      %p441 = por %p439, %p440
      %s442 = ssub.s32 %s34, %s41
      %p443 = scmp.eq.s32.totalorder %s442, 0
      %s445 = sadd.s32 %s444, 1
      %s446 = scalar_select %p443, %s444, %s445
      %p449 = pneg %p443
      %p450 = scmp.eq.s32.totalorder %s26, 3
      %p451 = por %p449, %p450
      %p452 = scmp.ne.s32.totalorder %s444, %s447
      %p453 = scmp.eq.s32.totalorder %s26, 0
      %p454 = por %p452, %p453
      %p455 = scmp.ne.s32.totalorder %s444, %s447
      %p456 = scmp.eq.s32.totalorder %s31, 3
      %p457 = por %p455, %p456
      %p458 = scmp.ne.s32.totalorder %s447, %s448
      %p459 = scmp.eq.s32.totalorder %s31, 0
      %p460 = por %p458, %p459
      %p461 = scmp.ne.s32.totalorder %s447, %s448
      %p462 = scmp.eq.s32.totalorder %s32, 3
      %p463 = por %p461, %p462
      %p465 = scmp.ne.s32.totalorder %s448, %s464
      %p466 = scmp.eq.s32.totalorder %s32, 0
      %p467 = por %p465, %p466
      %s468 = ssub.s32 %s33, %s45
      %p469 = scmp.eq.s32.totalorder %s468, 0
      %s471 = sadd.s32 %s470, 1
      %s472 = scalar_select %p469, %s470, %s471
      %p475 = pneg %p469
      %p476 = scmp.eq.s32.totalorder %s26, 3
      %p477 = por %p475, %p476
      %p478 = scmp.ne.s32.totalorder %s470, %s473
      %p479 = scmp.eq.s32.totalorder %s26, 0
      %p480 = por %p478, %p479
      %p481 = scmp.ne.s32.totalorder %s470, %s473
      %p482 = scmp.eq.s32.totalorder %s31, 3
      %p483 = por %p481, %p482
      %p484 = scmp.ne.s32.totalorder %s473, %s474
      %p485 = scmp.eq.s32.totalorder %s31, 0
      %p486 = por %p484, %p485
      %p487 = scmp.ne.s32.totalorder %s473, %s474
      %p488 = scmp.eq.s32.totalorder %s32, 3
      %p489 = por %p487, %p488
      %p491 = scmp.ne.s32.totalorder %s474, %s490
      %p492 = scmp.eq.s32.totalorder %s32, 0
      %p493 = por %p491, %p492
      %p494 = scmp.le.s32.totalorder 1, %s26
      %p495 = scmp.lt.s32.totalorder %s26, 5
      %p496 = pnand %p494, %p495
      %p497 = pneg %p496
      // Predicated region
      $region9: #{clip_vision_encoder_forward.1} parent=5 // pred_check
        _
      $region10: #{clip_vision_encoder_forward.1} parent=5 // pred_check_branch
        %499 = sbr.rel (%p496) target = $region12
      $region11: #{clip_vision_encoder_forward.1} parent=5 // pred_region
        %s500 = ssub.s32 %s26, 1
        // Predicated region
        $region13: #{clip_vision_encoder_forward.1} parent=11 // pred_check
          %p501 = pneg %p85
        $region14: #{clip_vision_encoder_forward.1} parent=11 // pred_check_branch
          %503 = sbr.rel (%p501) target = $region16
        $region15: #{clip_vision_encoder_forward.1} parent=11 // pred_region
          _
        $region16: #{clip_vision_encoder_forward.1} parent=11 // pred_fallthru
          _
        // Predicated region
        $region17: #{clip_vision_encoder_forward.1} parent=11 // pred_check
          %p504 = pneg %p106
        $region18: #{clip_vision_encoder_forward.1} parent=11 // pred_check_branch
          %506 = sbr.rel (%p504) target = $region20
        $region19: #{clip_vision_encoder_forward.1} parent=11 // pred_region
          _
        $region20: #{clip_vision_encoder_forward.1} parent=11 // pred_fallthru
          _
        // Predicated region
        $region21: #{clip_vision_encoder_forward.1} parent=11 // pred_check
          %p507 = pneg %p127
        $region22: #{clip_vision_encoder_forward.1} parent=11 // pred_check_branch
          %509 = sbr.rel (%p507) target = $region24
        $region23: #{clip_vision_encoder_forward.1} parent=11 // pred_region
          _
        $region24: #{clip_vision_encoder_forward.1} parent=11 // pred_fallthru
          _
        // Predicated region
        $region25: #{clip_vision_encoder_forward.1} parent=11 // pred_check
          %p510 = pneg %p148
        $region26: #{clip_vision_encoder_forward.1} parent=11 // pred_check_branch
          %512 = sbr.rel (%p510) target = $region28
        $region27: #{clip_vision_encoder_forward.1} parent=11 // pred_region
          _
        $region28: #{clip_vision_encoder_forward.1} parent=11 // pred_fallthru
          _
      $region12: #{clip_vision_encoder_forward.1} parent=5 // pred_fallthru
        _
      %p513 = scmp.lt.s32.totalorder %s26, 4
      // Predicated region
      $region29: #{clip_vision_encoder_forward.1} parent=5 // pred_check
        %p514 = pneg %p513
      $region30: #{clip_vision_encoder_forward.1} parent=5 // pred_check_branch
        %516 = sbr.rel (%p514) target = $region32
      $region31: #{clip_vision_encoder_forward.1} parent=5 // pred_region
        // Predicated region
        $region33: #{clip_vision_encoder_forward.1} parent=31 // pred_check
          %p517 = pneg %p58
        $region34: #{clip_vision_encoder_forward.1} parent=31 // pred_check_branch
          %519 = sbr.rel (%p517) target = $region36
        $region35: #{clip_vision_encoder_forward.1} parent=31 // pred_region
          %p520 = scmp.lt.s32.totalorder %s33, 1
          %s521 = scalar_select %p520, %s33, 1
          %s522 = smul.addr %s521, 3
          %s523 = smul.addr %s522, 8
          %s524 = scalar_lea.vmem %s0, %s523
        $region36: #{clip_vision_encoder_forward.1} parent=31 // pred_fallthru
          _
        // Predicated region
        $region37: #{clip_vision_encoder_forward.1} parent=31 // pred_check
          %p525 = pneg %p168
        $region38: #{clip_vision_encoder_forward.1} parent=31 // pred_check_branch
          %527 = sbr.rel (%p525) target = $region40
        $region39: #{clip_vision_encoder_forward.1} parent=31 // pred_region
          %p528 = scmp.lt.s32.totalorder %s34, 1
          %s529 = scalar_select %p528, %s34, 1
          %s530 = smul.addr %s529, 4
          %s531 = smul.addr %s530, 4
          %s532 = scalar_lea.vmem %s5, %s531
        $region40: #{clip_vision_encoder_forward.1} parent=31 // pred_fallthru
          _
        // Predicated region
        $region41: #{clip_vision_encoder_forward.1} parent=31 // pred_check
          %p533 = pneg %p194
        $region42: #{clip_vision_encoder_forward.1} parent=31 // pred_check_branch
          %535 = sbr.rel (%p533) target = $region44
        $region43: #{clip_vision_encoder_forward.1} parent=31 // pred_region
          %p536 = scmp.lt.s32.totalorder %s34, 1
          %s537 = scalar_select %p536, %s34, 1
          %s538 = scalar_lea.vmem %s6, %s537
        $region44: #{clip_vision_encoder_forward.1} parent=31 // pred_fallthru
          _
        // Predicated region
        $region45: #{clip_vision_encoder_forward.1} parent=31 // pred_check
          %p539 = pneg %p220
        $region46: #{clip_vision_encoder_forward.1} parent=31 // pred_check_branch
          %541 = sbr.rel (%p539) target = $region48
        $region47: #{clip_vision_encoder_forward.1} parent=31 // pred_region
          %p542 = scmp.lt.s32.totalorder %s34, 1
          %s543 = scalar_select %p542, %s34, 1
          %s544 = smul.addr %s543, 4
          %s545 = smul.addr %s544, 4
          %s546 = scalar_lea.vmem %s7, %s545
        $region48: #{clip_vision_encoder_forward.1} parent=31 // pred_fallthru
          _
        // Predicated region
        $region49: #{clip_vision_encoder_forward.1} parent=31 // pred_check
          %p547 = pneg %p246
        $region50: #{clip_vision_encoder_forward.1} parent=31 // pred_check_branch
          %549 = sbr.rel (%p547) target = $region52
        $region51: #{clip_vision_encoder_forward.1} parent=31 // pred_region
          %p550 = scmp.lt.s32.totalorder %s34, 1
          %s551 = scalar_select %p550, %s34, 1
          %s552 = scalar_lea.vmem %s8, %s551
        $region52: #{clip_vision_encoder_forward.1} parent=31 // pred_fallthru
          _
        // Predicated region
        $region53: #{clip_vision_encoder_forward.1} parent=31 // pred_check
          %p553 = pneg %p272
        $region54: #{clip_vision_encoder_forward.1} parent=31 // pred_check_branch
          %555 = sbr.rel (%p553) target = $region56
        $region55: #{clip_vision_encoder_forward.1} parent=31 // pred_region
          %p556 = scmp.lt.s32.totalorder %s34, 1
          %s557 = scalar_select %p556, %s34, 1
          %s558 = scalar_lea.vmem %s9, %s557
        $region56: #{clip_vision_encoder_forward.1} parent=31 // pred_fallthru
          _
        // Predicated region
        $region57: #{clip_vision_encoder_forward.1} parent=31 // pred_check
          %p559 = pneg %p298
        $region58: #{clip_vision_encoder_forward.1} parent=31 // pred_check_branch
          %561 = sbr.rel (%p559) target = $region60
        $region59: #{clip_vision_encoder_forward.1} parent=31 // pred_region
          %p562 = scmp.lt.s32.totalorder %s34, 1
          %s563 = scalar_select %p562, %s34, 1
          %s564 = scalar_lea.vmem %s10, %s563
        $region60: #{clip_vision_encoder_forward.1} parent=31 // pred_fallthru
          _
        // Predicated region
        $region61: #{clip_vision_encoder_forward.1} parent=31 // pred_check
          %p565 = pneg %p324
        $region62: #{clip_vision_encoder_forward.1} parent=31 // pred_check_branch
          %567 = sbr.rel (%p565) target = $region64
        $region63: #{clip_vision_encoder_forward.1} parent=31 // pred_region
          %p568 = scmp.lt.s32.totalorder %s34, 1
          %s569 = scalar_select %p568, %s34, 1
          %s570 = scalar_lea.vmem %s11, %s569
        $region64: #{clip_vision_encoder_forward.1} parent=31 // pred_fallthru
          _
        // Predicated region
        $region65: #{clip_vision_encoder_forward.1} parent=31 // pred_check
          %p571 = pneg %p350
        $region66: #{clip_vision_encoder_forward.1} parent=31 // pred_check_branch
          %573 = sbr.rel (%p571) target = $region68
        $region67: #{clip_vision_encoder_forward.1} parent=31 // pred_region
          %p574 = scmp.lt.s32.totalorder %s34, 1
          %s575 = scalar_select %p574, %s34, 1
          %s576 = scalar_lea.vmem %s12, %s575
        $region68: #{clip_vision_encoder_forward.1} parent=31 // pred_fallthru
          _
        // Predicated region
        $region69: #{clip_vision_encoder_forward.1} parent=31 // pred_check
          %p577 = pneg %p376
        $region70: #{clip_vision_encoder_forward.1} parent=31 // pred_check_branch
          %579 = sbr.rel (%p577) target = $region72
        $region71: #{clip_vision_encoder_forward.1} parent=31 // pred_region
          %p580 = scmp.lt.s32.totalorder %s34, 1
          %s581 = scalar_select %p580, %s34, 1
          %s582 = smul.addr %s581, 4
          %s583 = smul.addr %s582, 4
          %s584 = scalar_lea.vmem %s13, %s583
        $region72: #{clip_vision_encoder_forward.1} parent=31 // pred_fallthru
          _
        // Predicated region
        $region73: #{clip_vision_encoder_forward.1} parent=31 // pred_check
          %p585 = pneg %p402
        $region74: #{clip_vision_encoder_forward.1} parent=31 // pred_check_branch
          %587 = sbr.rel (%p585) target = $region76
        $region75: #{clip_vision_encoder_forward.1} parent=31 // pred_region
          %p588 = scmp.lt.s32.totalorder %s34, 1
          %s589 = scalar_select %p588, %s34, 1
          %s590 = scalar_lea.vmem %s14, %s589
        $region76: #{clip_vision_encoder_forward.1} parent=31 // pred_fallthru
          _
        // Predicated region
        $region77: #{clip_vision_encoder_forward.1} parent=31 // pred_check
          %p591 = pneg %p428
        $region78: #{clip_vision_encoder_forward.1} parent=31 // pred_check_branch
          %593 = sbr.rel (%p591) target = $region80
        $region79: #{clip_vision_encoder_forward.1} parent=31 // pred_region
          %p594 = scmp.lt.s32.totalorder %s34, 1
          %s595 = scalar_select %p594, %s34, 1
          %s596 = smul.addr %s595, 16
          %s597 = smul.addr %s596, 4
          %s598 = scalar_lea.vmem %s15, %s597
        $region80: #{clip_vision_encoder_forward.1} parent=31 // pred_fallthru
          _
        // Predicated region
        $region81: #{clip_vision_encoder_forward.1} parent=31 // pred_check
          %p599 = pneg %p454
        $region82: #{clip_vision_encoder_forward.1} parent=31 // pred_check_branch
          %601 = sbr.rel (%p599) target = $region84
        $region83: #{clip_vision_encoder_forward.1} parent=31 // pred_region
          %p602 = scmp.lt.s32.totalorder %s34, 1
          %s603 = scalar_select %p602, %s34, 1
          %s604 = scalar_lea.vmem %s16, %s603
        $region84: #{clip_vision_encoder_forward.1} parent=31 // pred_fallthru
          _
      $region32: #{clip_vision_encoder_forward.1} parent=5 // pred_fallthru
        _
      %p605 = scmp.le.s32.totalorder 1, %s26
      %p606 = scmp.lt.s32.totalorder %s26, 5
      %p607 = pnand %p605, %p606
      %p608 = pneg %p607
      // Predicated region
      $region85: #{clip_vision_encoder_forward.1} parent=5 // pred_check
        _
      $region86: #{clip_vision_encoder_forward.1} parent=5 // pred_check_branch
        %610 = sbr.rel (%p607) target = $region88
      $region87: #{clip_vision_encoder_forward.1} parent=5 // pred_region
        %s611 = ssub.s32 %s26, 1
        %p612 = scmp.lt.s32.totalorder %s35, 1
        %s613 = scalar_select %p612, %s35, 1
        %s614 = smul.addr %s613, 3
        %s615 = smul.addr %s614, 8
        %s616 = scalar_lea.vmem %s0, %s615
        %p617 = pneg %p64
        %p618 = pneg %p61
        %p619 = pneg %p85
        %p620 = pneg %p82
        %p621 = pneg %p106
        %p622 = pneg %p103
        %p623 = pneg %p127
        %p624 = pneg %p124
        %p625 = pneg %p148
        %p626 = pneg %p145
        %p627 = scmp.lt.s32.totalorder %s36, 1
        %s628 = scalar_select %p627, %s36, 1
        %s629 = smul.addr %s628, 4
        %s630 = smul.addr %s629, 4
        %s631 = scalar_lea.vmem %s5, %s630
        %p632 = pneg %p174
        %p633 = pneg %p171
        %p634 = scmp.lt.s32.totalorder %s36, 1
        %s635 = scalar_select %p634, %s36, 1
        %s636 = scalar_lea.vmem %s6, %s635
        %p637 = pneg %p200
        %p638 = pneg %p197
        %p639 = scmp.lt.s32.totalorder %s36, 1
        %s640 = scalar_select %p639, %s36, 1
        %s641 = smul.addr %s640, 4
        %s642 = smul.addr %s641, 4
        %s643 = scalar_lea.vmem %s7, %s642
        %p644 = pneg %p226
        %p645 = pneg %p223
        %p646 = scmp.lt.s32.totalorder %s36, 1
        %s647 = scalar_select %p646, %s36, 1
        %s648 = scalar_lea.vmem %s8, %s647
        %p649 = pneg %p252
        %p650 = pneg %p249
        %p651 = scmp.lt.s32.totalorder %s36, 1
        %s652 = scalar_select %p651, %s36, 1
        %s653 = scalar_lea.vmem %s9, %s652
        %p654 = pneg %p278
        %p655 = pneg %p275
        %p656 = scmp.lt.s32.totalorder %s36, 1
        %s657 = scalar_select %p656, %s36, 1
        %s658 = scalar_lea.vmem %s10, %s657
        %p659 = pneg %p304
        %p660 = pneg %p301
        %p661 = scmp.lt.s32.totalorder %s36, 1
        %s662 = scalar_select %p661, %s36, 1
        %s663 = scalar_lea.vmem %s11, %s662
        %p664 = pneg %p330
        %p665 = pneg %p327
        %p666 = scmp.lt.s32.totalorder %s36, 1
        %s667 = scalar_select %p666, %s36, 1
        %s668 = scalar_lea.vmem %s12, %s667
        %p669 = pneg %p356
        %p670 = pneg %p353
        %p671 = scmp.lt.s32.totalorder %s36, 1
        %s672 = scalar_select %p671, %s36, 1
        %s673 = smul.addr %s672, 4
        %s674 = smul.addr %s673, 4
        %s675 = scalar_lea.vmem %s13, %s674
        %p676 = pneg %p382
        %p677 = pneg %p379
        %p678 = scmp.lt.s32.totalorder %s36, 1
        %s679 = scalar_select %p678, %s36, 1
        %s680 = scalar_lea.vmem %s14, %s679
        %p681 = pneg %p408
        %p682 = pneg %p405
        %p683 = scmp.lt.s32.totalorder %s36, 1
        %s684 = scalar_select %p683, %s36, 1
        %s685 = smul.addr %s684, 16
        %s686 = smul.addr %s685, 4
        %s687 = scalar_lea.vmem %s15, %s686
        %p688 = pneg %p434
        %p689 = pneg %p431
        %p690 = scmp.lt.s32.totalorder %s36, 1
        %s691 = scalar_select %p690, %s36, 1
        %s692 = scalar_lea.vmem %s16, %s691
        %p693 = pneg %p460
        %p694 = pneg %p457
        %p695 = pneg %p486
        %p696 = pneg %p483
        %s697 = sand.u32 %s473, 1
        %s698 = scalar_lea.sflag [#allocation4], %s697
        %s699 = sand.u32 %s473, 1
        %s700 = scalar_lea.vmem [#allocation3], %s699
        %p701 = scmp.lt.s32.totalorder %s35, 1
        %s702 = scalar_select %p701, %s35, 1
        %s703 = smul.addr %s702, 3
        %s704 = smul.addr %s703, 8
        %s705 = scalar_lea.vmem %s0, %s704
        %p706 = scmp.lt.s32.totalorder %s36, 1
        %s707 = scalar_select %p706, %s36, 1
        %s708 = smul.addr %s707, 4
        %s709 = smul.addr %s708, 4
        %s710 = scalar_lea.vmem %s5, %s709
        %p711 = scmp.lt.s32.totalorder %s36, 1
        %s712 = scalar_select %p711, %s36, 1
        %s713 = scalar_lea.vmem %s6, %s712
        %p714 = scmp.lt.s32.totalorder %s36, 1
        %s715 = scalar_select %p714, %s36, 1
        %s716 = smul.addr %s715, 4
        %s717 = smul.addr %s716, 4
        %s718 = scalar_lea.vmem %s7, %s717
        %p719 = scmp.lt.s32.totalorder %s36, 1
        %s720 = scalar_select %p719, %s36, 1
        %s721 = scalar_lea.vmem %s8, %s720
        %p722 = scmp.lt.s32.totalorder %s36, 1
        %s723 = scalar_select %p722, %s36, 1
        %s724 = scalar_lea.vmem %s9, %s723
        %p725 = scmp.lt.s32.totalorder %s36, 1
        %s726 = scalar_select %p725, %s36, 1
        %s727 = scalar_lea.vmem %s10, %s726
        %p728 = scmp.lt.s32.totalorder %s36, 1
        %s729 = scalar_select %p728, %s36, 1
        %s730 = scalar_lea.vmem %s11, %s729
        %p731 = scmp.lt.s32.totalorder %s36, 1
        %s732 = scalar_select %p731, %s36, 1
        %s733 = scalar_lea.vmem %s12, %s732
        %p734 = scmp.lt.s32.totalorder %s36, 1
        %s735 = scalar_select %p734, %s36, 1
        %s736 = smul.addr %s735, 4
        %s737 = smul.addr %s736, 4
        %s738 = scalar_lea.vmem %s13, %s737
        %p739 = scmp.lt.s32.totalorder %s36, 1
        %s740 = scalar_select %p739, %s36, 1
        %s741 = scalar_lea.vmem %s14, %s740
        %p742 = scmp.lt.s32.totalorder %s36, 1
        %s743 = scalar_select %p742, %s36, 1
        %s744 = smul.addr %s743, 16
        %s745 = smul.addr %s744, 4
        %s746 = scalar_lea.vmem %s15, %s745
        %p747 = scmp.lt.s32.totalorder %s36, 1
        %s748 = scalar_select %p747, %s36, 1
        %s749 = scalar_lea.vmem %s16, %s748
        %p751 = scmp.eq.s32.totalorder %s36, 0
        // Predicated region
        $region89: #{clip_vision_encoder_forward.1} parent=87 // pred_check
          %p752 = pneg %p751
        $region90: #{clip_vision_encoder_forward.1} parent=87 // pred_check_branch
          %754 = sbr.rel (%p752) target = $region92
        $region91: #{clip_vision_encoder_forward.1} parent=87 // pred_region
          %v755 = vld [vmem:[%s705] sm:$0xff]
          %v756 = vld [vmem:[%s705 + $0x8] sm:$0xff]
          %v757 = vld [vmem:[%s705 + $0x10] sm:$0x1]
          %v758 = vpack.c.bf16 %v756, %v755
          %v759 = vpack.c.bf16 %v757, %v757
          %v760 = vld [vmem:[%s1] sm:$0xf]
          %v761 = vld [vmem:[%s1 + $0x4] sm:$0xf]
          %v762 = vld [vmem:[%s1 + $0x8] sm:$0xf]
          %v763 = vld [vmem:[%s1 + $0xc] sm:$0xf]
          %v764 = vld [vmem:[%s1 + $0x10] sm:$0xf]
          %v765 = vld [vmem:[%s1 + $0x14] sm:$0xf]
          %v766 = vld [vmem:[%s2] sm:$0xff]
          %v767 = vld [vmem:[%s2 + $0x8] sm:$0xff]
          %v768 = vld [vmem:[%s2 + $0x10] sm:$0x1]
          %v775 = vunpack.c.l.b16 %v760
          %v776 = vunpack.c.l.b16 %v761
          %v777 = vunpack.c.l.b16 %v762
          %v778 = vunpack.c.l.b16 %v763
          %v779 = vunpack.c.l.b16 %v764
          %v780 = vunpack.c.l.b16 %v765
          %v781 = vpack.c.b16 %v776, %v775
          %v782 = vpack.c.b16 %v778, %v777
          %v783 = vpack.c.b16 %v780, %v779
          %vm787 = vcmask 392192
          %v789 = vsel %vm787, %v758, 0
          %v792 = vsel %vm787, %v759, 0
          %794 = vmatprep.subr.bf16.mxu0 0
          %795 = vmatpush1.bf16.msra.mxu0 0
          %796 = vmatprep.subr.bf16.mxu0 0
          %797 = vmatpush1.bf16.msra.mxu0 0
          %798 = vmatprep.subr.bf16.mxu0 0
          %799 = vmatpush1.bf16.msra.mxu0 0
          %800 = vmatprep.subr.bf16.mxu0 0
          %801 = vmatpush1.bf16.msra.mxu0 0
          %802 = vmatprep.subr.bf16.mxu0 0
          %803 = vmatpush1.bf16.msra.mxu0 0
          %804 = vmatprep.subr.bf16.mxu0 0
          %805 = vmatpush1.bf16.msra.mxu0 %v783
          %806 = vmatprep.subr.bf16.mxu0 0
          %807 = vmatpush1.bf16.msra.mxu0 %v782
          %808 = vmatprep.subr.bf16.mxu0 0
          %809 = vmatpush1.bf16.msra.mxu0 %v781
          %810 = vmatprep.subr.bf16.mxu0 0
          %811 = vmatpush2.bf16.msra.mxu0 0
          %812 = vmatprep.subr.bf16.mxu0 0
          %813 = vmatpush2.bf16.msra.mxu0 0
          %814 = vmatprep.subr.bf16.mxu0 0
          %815 = vmatpush2.bf16.msra.mxu0 0
          %816 = vmatprep.subr.bf16.mxu0 0
          %817 = vmatpush2.bf16.msra.mxu0 0
          %818 = vmatprep.subr.bf16.mxu0 0
          %819 = vmatpush2.bf16.msra.mxu0 0
          %820 = vmatprep.subr.bf16.mxu0 0
          %821 = vmatpush2.bf16.msra.mxu0 0
          %822 = vmatprep.subr.bf16.mxu0 0
          %823 = vmatpush2.bf16.msra.mxu0 0
          %824 = vmatprep.subr.bf16.mxu0 0
          %825 = vmatpush2.bf16.msra.mxu0 0
          %826 = vmatprep.mubr.bf16.mxu0 0
          %827 = vmatmul.mubr.bf16.gmra.mxu0 %v789
          %v828 = vpop.f32.mrf.mxu0
          %v829 = vadd.f32 %v766, %v828
          %v830 = vpop.f32.mrf.mxu0
          %v831 = vpop.f32.mrf.mxu0
          %v832 = vadd.f32 %v767, %v831
          %v833 = vpop.f32.mrf.mxu0
          %834 = vmatprep.mubr.bf16.mxu0 0
          %835 = vmatmul.mubr.bf16.gmra.mxu0 %v792
          %v836 = vpop.f32.mrf.mxu0
          %v837 = vadd.f32 %v768, %v836
          %v838 = vpop.f32.mrf.mxu0
          %v839 = vpop.f32.mrf.mxu0
          %v840 = vpop.f32.mrf.mxu0
          %841 = vdwg.mxu0
          %v842 = vld [vmem:[%s3] sm:$0x1]
          %v843 = vld [vmem:[%s4] sm:$0x1]
          %vm844 = vcmask 261120
          %v845 = vsel %vm844, %v829, 0.0
          %846 = vadd.xlane.f32.xlu0 %v845
          %v847 = vpop.xlane.xlu0 %846
          %v848 = vsel %vm844, %v832, 0.0
          %849 = vadd.xlane.f32.xlu0 %v848
          %v850 = vpop.xlane.xlu0 %849
          %vm851 = vcmask 253952
          %v852 = vsel %vm851, %v837, 0.0
          %853 = vadd.xlane.f32.xlu0 %v852
          %v854 = vpop.xlane.xlu0 %853
          %v855 = vrcp.pop 32.0
          %v856 = vmul.f32 %v847, %v855
          %v857 = vmul.f32 %v850, %v855
          %v858 = vmul.f32 %v854, %v855
          %v859 = vsub.f32 %v829, %v856
          %v860 = vsub.f32 %v832, %v857
          %v861 = vsub.f32 %v837, %v858
          %v862 = vmul.f32 %v859, %v859
          %v863 = vmul.f32 %v860, %v860
          %v864 = vmul.f32 %v861, %v861
          %v865 = vsel %vm844, %v862, 0.0
          %866 = vadd.xlane.f32.xlu0 %v865
          %v867 = vpop.xlane.xlu0 %866
          %v868 = vsel %vm844, %v863, 0.0
          %869 = vadd.xlane.f32.xlu0 %v868
          %v870 = vpop.xlane.xlu0 %869
          %v871 = vsel %vm851, %v864, 0.0
          %872 = vadd.xlane.f32.xlu0 %v871
          %v873 = vpop.xlane.xlu0 %872
          %v874 = vmul.f32 %v867, %v855
          %v875 = vmul.f32 %v870, %v855
          %v876 = vmul.f32 %v873, %v855
          %v877 = vadd.f32 %v874, 1e-05
          %v878 = vadd.f32 %v875, 1e-05
          %v879 = vadd.f32 %v876, 1e-05
          %v880 = vrsqrt.pop %v877
          %v881 = vrsqrt.pop %v878
          %v882 = vrsqrt.pop %v879
          %v883 = vmul.f32 %v859, %v880
          %v884 = vmul.f32 %v860, %v881
          %v885 = vmul.f32 %v861, %v882
          %v887 = vlaneseq
          %v888 = vshrl.u32 %v887, 7
          %v889 = vsub.s32 0, %v888
          %v890 = vrot.slane %v842, %v889
          %v892 = vmul.f32 %v883, %v890
          %v893 = vmul.f32 %v884, %v890
          %v894 = vmul.f32 %v885, %v890
          %v896 = vlaneseq
          %v897 = vshrl.u32 %v896, 7
          %v898 = vsub.s32 0, %v897
          %v899 = vrot.slane %v843, %v898
          %v901 = vadd.f32 %v892, %v899
          %v902 = vadd.f32 %v893, %v899
          %v903 = vadd.f32 %v894, %v899
          %904 = vst.msk [vmem:[#allocation2] sm:$0xff] %vm844, %v901
          %905 = vst.msk [vmem:[#allocation2 + $0x8] sm:$0xff] %vm844, %v902
          %906 = vst.msk [vmem:[#allocation2 + $0x10] sm:$0x1] %vm851, %v903
        $region92: #{clip_vision_encoder_forward.1} parent=87 // pred_fallthru
          _
        %v907 = vld [vmem:[#allocation2] sm:$0xff]
        %v908 = vld [vmem:[#allocation2 + $0x8] sm:$0xff]
        %v909 = vld [vmem:[#allocation2 + $0x10] sm:$0x1]
        %v910 = vld [vmem:[%s724] sm:$0x1]
        %v911 = vld [vmem:[%s727] sm:$0x1]
        %vm912 = vcmask 261120
        %v913 = vsel %vm912, %v907, 0.0
        %914 = vadd.xlane.f32.xlu0 %v913
        %v915 = vpop.xlane.xlu0 %914
        %v916 = vsel %vm912, %v908, 0.0
        %917 = vadd.xlane.f32.xlu0 %v916
        %v918 = vpop.xlane.xlu0 %917
        %vm919 = vcmask 253952
        %v920 = vsel %vm919, %v909, 0.0
        %921 = vadd.xlane.f32.xlu0 %v920
        %v922 = vpop.xlane.xlu0 %921
        %v923 = vrcp.pop 32.0
        %v924 = vmul.f32 %v915, %v923
        %v925 = vmul.f32 %v918, %v923
        %v926 = vmul.f32 %v922, %v923
        %v927 = vsub.f32 %v907, %v924
        %v928 = vsub.f32 %v908, %v925
        %v929 = vsub.f32 %v909, %v926
        %v930 = vmul.f32 %v927, %v927
        %v931 = vmul.f32 %v928, %v928
        %v932 = vmul.f32 %v929, %v929
        %v933 = vsel %vm912, %v930, 0.0
        %934 = vadd.xlane.f32.xlu0 %v933
        %v935 = vpop.xlane.xlu0 %934
        %v936 = vsel %vm912, %v931, 0.0
        %937 = vadd.xlane.f32.xlu0 %v936
        %v938 = vpop.xlane.xlu0 %937
        %v939 = vsel %vm919, %v932, 0.0
        %940 = vadd.xlane.f32.xlu0 %v939
        %v941 = vpop.xlane.xlu0 %940
        %v942 = vmul.f32 %v935, %v923
        %v943 = vmul.f32 %v938, %v923
        %v944 = vmul.f32 %v941, %v923
        %v945 = vadd.f32 %v942, 1e-05
        %v946 = vadd.f32 %v943, 1e-05
        %v947 = vadd.f32 %v944, 1e-05
        %v948 = vrsqrt.pop %v945
        %v949 = vrsqrt.pop %v946
        %v950 = vrsqrt.pop %v947
        %v951 = vmul.f32 %v927, %v948
        %v952 = vmul.f32 %v928, %v949
        %v953 = vmul.f32 %v929, %v950
        %v955 = vlaneseq
        %v956 = vshrl.u32 %v955, 7
        %v957 = vsub.s32 0, %v956
        %v958 = vrot.slane %v910, %v957
        %v960 = vmul.f32 %v951, %v958
        %v961 = vmul.f32 %v952, %v958
        %v962 = vmul.f32 %v953, %v958
        %v964 = vlaneseq
        %v965 = vshrl.u32 %v964, 7
        %v966 = vsub.s32 0, %v965
        %v967 = vrot.slane %v911, %v966
        %v969 = vadd.f32 %v960, %v967
        %v970 = vadd.f32 %v961, %v967
        %v971 = vadd.f32 %v962, %v967
        %v972 = vpack.c.bf16 %v970, %v969
        %v973 = vpack.c.bf16 %v971, %v971
        %v974 = vld [vmem:[%s710] sm:$0xf]
        %v975 = vld [vmem:[%s710 + $0x4] sm:$0xf]
        %v976 = vld [vmem:[%s710 + $0x8] sm:$0xf]
        %v977 = vld [vmem:[%s710 + $0xc] sm:$0xf]
        %v978 = vld [vmem:[%s713] sm:$0x1]
        %v980 = vlaneseq
        %v981 = vshrl.u32 %v980, 7
        %v982 = vsub.s32 0, %v981
        %v983 = vrot.slane %v978, %v982
        %v989 = vunpack.c.l.b16 %v974
        %v990 = vunpack.c.l.b16 %v975
        %v991 = vunpack.c.l.b16 %v976
        %v992 = vunpack.c.l.b16 %v977
        %v993 = vpack.c.b16 %v990, %v989
        %v994 = vpack.c.b16 %v992, %v991
        %v998 = vsel %vm912, %v972, 0
        %v1001 = vsel %vm912, %v973, 0
        %1003 = vmatprep.subr.bf16.mxu0 0
        %1004 = vmatpush1.bf16.msra.mxu0 0
        %1005 = vmatprep.subr.bf16.mxu0 0
        %1006 = vmatpush1.bf16.msra.mxu0 0
        %1007 = vmatprep.subr.bf16.mxu0 0
        %1008 = vmatpush1.bf16.msra.mxu0 0
        %1009 = vmatprep.subr.bf16.mxu0 0
        %1010 = vmatpush1.bf16.msra.mxu0 0
        %1011 = vmatprep.subr.bf16.mxu0 0
        %1012 = vmatpush1.bf16.msra.mxu0 0
        %1013 = vmatprep.subr.bf16.mxu0 0
        %1014 = vmatpush1.bf16.msra.mxu0 0
        %1015 = vmatprep.subr.bf16.mxu0 0
        %1016 = vmatpush1.bf16.msra.mxu0 %v994
        %1017 = vmatprep.subr.bf16.mxu0 0
        %1018 = vmatpush1.bf16.msra.mxu0 %v993
        %1019 = vmatprep.subr.bf16.mxu0 0
        %1020 = vmatpush2.bf16.msra.mxu0 0
        %1021 = vmatprep.subr.bf16.mxu0 0
        %1022 = vmatpush2.bf16.msra.mxu0 0
        %1023 = vmatprep.subr.bf16.mxu0 0
        %1024 = vmatpush2.bf16.msra.mxu0 0
        %1025 = vmatprep.subr.bf16.mxu0 0
        %1026 = vmatpush2.bf16.msra.mxu0 0
        %1027 = vmatprep.subr.bf16.mxu0 0
        %1028 = vmatpush2.bf16.msra.mxu0 0
        %1029 = vmatprep.subr.bf16.mxu0 0
        %1030 = vmatpush2.bf16.msra.mxu0 0
        %1031 = vmatprep.subr.bf16.mxu0 0
        %1032 = vmatpush2.bf16.msra.mxu0 0
        %1033 = vmatprep.subr.bf16.mxu0 0
        %1034 = vmatpush2.bf16.msra.mxu0 0
        %1035 = vmatprep.mubr.bf16.mxu0 0
        %1036 = vmatmul.mubr.bf16.gmra.mxu0 %v998
        %v1037 = vpop.f32.mrf.mxu0
        %v1038 = vadd.f32 %v983, %v1037
        %v1039 = vpop.f32.mrf.mxu0
        %v1040 = vpop.f32.mrf.mxu0
        %v1041 = vadd.f32 %v983, %v1040
        %v1042 = vpop.f32.mrf.mxu0
        %1043 = vmatprep.mubr.bf16.mxu0 0
        %1044 = vmatmul.mubr.bf16.gmra.mxu0 %v1001
        %v1045 = vpop.f32.mrf.mxu0
        %v1046 = vadd.f32 %v983, %v1045
        %v1047 = vpop.f32.mrf.mxu0
        %v1048 = vpop.f32.mrf.mxu0
        %v1049 = vpop.f32.mrf.mxu0
        %1050 = vdwg.mxu0
        %v1051 = vpack.c.bf16 %v1041, %v1038
        %v1052 = vpack.c.bf16 %v1046, %v1046
        %1055 = vrot.lane.b32.xlu0 %v1051, 96
        %v1056 = vpop.permute.xlu0 %1055
        %1057 = vrot.lane.b32.xlu0 %v1052, 96
        %v1058 = vpop.permute.xlu0 %1057
        %vm1059 = vcmask 64512
        %v1061 = vsel %vm1059, %v1051, 0
        %v1064 = vsel %vm1059, %v1052, 0
        %v1067 = vsel %vm1059, %v1056, 0
        %v1070 = vsel %vm1059, %v1058, 0
        %1072 = vmatprep.subr.bf16.mxu0 0
        %1073 = vmatpush1.bf16.xpose.msra.mxu0 0
        %1074 = vmatprep.subr.bf16.mxu0 0
        %1075 = vmatpush1.bf16.xpose.msra.mxu0 0
        %1076 = vmatprep.subr.bf16.mxu0 0
        %1077 = vmatpush1.bf16.xpose.msra.mxu0 0
        %1078 = vmatprep.subr.bf16.mxu0 0
        %1079 = vmatpush1.bf16.xpose.msra.mxu0 0
        %1080 = vmatprep.subr.bf16.mxu0 0
        %1081 = vmatpush1.bf16.xpose.msra.mxu0 0
        %1082 = vmatprep.subr.bf16.mxu0 0
        %1083 = vmatpush1.bf16.xpose.msra.mxu0 0
        %1084 = vmatprep.subr.bf16.mxu0 0
        %1085 = vmatpush1.bf16.xpose.msra.mxu0 %v1070
        %1086 = vmatprep.subr.bf16.mxu0 0
        %1087 = vmatpush1.bf16.xpose.msra.mxu0 %v1067
        %1088 = vmatprep.subr.bf16.mxu0 0
        %1089 = vmatpush2.bf16.xpose.msra.mxu0 0
        %1090 = vmatprep.subr.bf16.mxu0 0
        %1091 = vmatpush2.bf16.xpose.msra.mxu0 0
        %1092 = vmatprep.subr.bf16.mxu0 0
        %1093 = vmatpush2.bf16.xpose.msra.mxu0 0
        %1094 = vmatprep.subr.bf16.mxu0 0
        %1095 = vmatpush2.bf16.xpose.msra.mxu0 0
        %1096 = vmatprep.subr.bf16.mxu0 0
        %1097 = vmatpush2.bf16.xpose.msra.mxu0 0
        %1098 = vmatprep.subr.bf16.mxu0 0
        %1099 = vmatpush2.bf16.xpose.msra.mxu0 0
        %1100 = vmatprep.subr.bf16.mxu0 0
        %1101 = vmatpush2.bf16.xpose.msra.mxu0 0
        %1102 = vmatprep.subr.bf16.mxu0 0
        %1103 = vmatpush2.bf16.xpose.msra.mxu0 0
        %1104 = vmatprep.mubr.bf16.mxu0 0
        %1105 = vmatmul.mubr.bf16.gmra.mxu0 %v1061
        %v1106 = vpop.f32.mrf.mxu0
        %v1107 = vadd.f32 0.0, %v1106
        %v1108 = vpop.f32.mrf.mxu0
        %v1109 = vpop.f32.mrf.mxu0
        %v1110 = vadd.f32 0.0, %v1109
        %v1111 = vpop.f32.mrf.mxu0
        %1112 = vmatprep.mubr.bf16.mxu0 0
        %1113 = vmatmul.mubr.bf16.gmra.mxu0 %v1064
        %v1114 = vpop.f32.mrf.mxu0
        %v1115 = vadd.f32 0.0, %v1114
        %v1116 = vpop.f32.mrf.mxu0
        %v1117 = vpop.f32.mrf.mxu0
        %v1118 = vpop.f32.mrf.mxu0
        %1119 = vdwg.mxu0
        %vm1120 = vcmask 138240
        %v1121 = vsel %vm1120, %v1107, -inf
        %1122 = vmax.xlane.f32.xlu0 %v1121
        %v1123 = vpop.xlane.xlu0 %1122
        %v1124 = vsel %vm1120, %v1110, -inf
        %1125 = vmax.xlane.f32.xlu0 %v1124
        %v1126 = vpop.xlane.xlu0 %1125
        %vm1127 = vcmask 131072
        %v1128 = vsel %vm1127, %v1115, -inf
        %1129 = vmax.xlane.f32.xlu0 %v1128
        %v1130 = vpop.xlane.xlu0 %1129
        %v1131 = vsub.f32 %v1107, %v1123
        %v1132 = vsub.f32 %v1110, %v1126
        %v1133 = vsub.f32 %v1115, %v1130
        %v1134 = vmul.f32 %v1131, 1.442695
        %v1135 = vpow.pop %v1134
        %v1136 = vmul.f32 %v1132, 1.442695
        %v1137 = vpow.pop %v1136
        %v1138 = vmul.f32 %v1133, 1.442695
        %v1139 = vpow.pop %v1138
        %v1140 = vsel %vm1120, %v1135, 0.0
        %1141 = vadd.xlane.f32.xlu0 %v1140
        %v1142 = vpop.xlane.xlu0 %1141
        %v1143 = vsel %vm1120, %v1137, 0.0
        %1144 = vadd.xlane.f32.xlu0 %v1143
        %v1145 = vpop.xlane.xlu0 %1144
        %v1146 = vsel %vm1127, %v1139, 0.0
        %1147 = vadd.xlane.f32.xlu0 %v1146
        %v1148 = vpop.xlane.xlu0 %1147
        %v1149 = vrcp.pop %v1142
        %v1150 = vrcp.pop %v1145
        %v1151 = vrcp.pop %v1148
        %v1152 = vmul.f32 %v1142, %v1149
        %v1153 = vmul.f32 %v1145, %v1150
        %v1154 = vmul.f32 %v1148, %v1151
        %v1155 = vsub.f32 2.0, %v1152
        %v1156 = vsub.f32 2.0, %v1153
        %v1157 = vsub.f32 2.0, %v1154
        %v1158 = vmul.f32 %v1149, %v1155
        %v1159 = vmul.f32 %v1150, %v1156
        %v1160 = vmul.f32 %v1151, %v1157
        %v1161 = vmul.f32 %v1135, %v1158
        %v1162 = vmul.f32 %v1137, %v1159
        %v1163 = vmul.f32 %v1139, %v1160
        %v1164 = vpack.c.bf16 %v1162, %v1161
        %v1165 = vpack.c.bf16 %v1163, %v1163
        %1166 = vrot.lane.b32.xlu0 %v1051, 64
        %v1167 = vpop.permute.xlu0 %1166
        %1168 = vrot.lane.b32.xlu0 %v1052, 64
        %v1169 = vpop.permute.xlu0 %1168
        %v1172 = vsel %vm1120, %v1164, 0
        %v1175 = vsel %vm1120, %v1165, 0
        %vm1177 = vcmask 1040384
        %v1178 = vsel 0, 4294967295, 65535
        %v1179 = vsel %vm1177, %v1178, 0
        %v1181 = vand.u32 %v1169, %v1179
        %1183 = vmatprep.subr.bf16.mxu0 0
        %1184 = vmatpush1.bf16.msra.mxu0 0
        %1185 = vmatprep.subr.bf16.mxu0 0
        %1186 = vmatpush1.bf16.msra.mxu0 0
        %1187 = vmatprep.subr.bf16.mxu0 0
        %1188 = vmatpush1.bf16.msra.mxu0 0
        %1189 = vmatprep.subr.bf16.mxu0 0
        %1190 = vmatpush1.bf16.msra.mxu0 0
        %1191 = vmatprep.subr.bf16.mxu0 0
        %1192 = vmatpush1.bf16.msra.mxu0 0
        %1193 = vmatprep.subr.bf16.mxu0 0
        %1194 = vmatpush1.bf16.msra.mxu0 0
        %1195 = vmatprep.subr.bf16.mxu0 0
        %1196 = vmatpush1.bf16.msra.mxu0 %v1181
        %1197 = vmatprep.subr.bf16.mxu0 0
        %1198 = vmatpush1.bf16.msra.mxu0 %v1167
        %1199 = vmatprep.subr.bf16.mxu0 0
        %1200 = vmatpush2.bf16.msra.mxu0 0
        %1201 = vmatprep.subr.bf16.mxu0 0
        %1202 = vmatpush2.bf16.msra.mxu0 0
        %1203 = vmatprep.subr.bf16.mxu0 0
        %1204 = vmatpush2.bf16.msra.mxu0 0
        %1205 = vmatprep.subr.bf16.mxu0 0
        %1206 = vmatpush2.bf16.msra.mxu0 0
        %1207 = vmatprep.subr.bf16.mxu0 0
        %1208 = vmatpush2.bf16.msra.mxu0 0
        %1209 = vmatprep.subr.bf16.mxu0 0
        %1210 = vmatpush2.bf16.msra.mxu0 0
        %1211 = vmatprep.subr.bf16.mxu0 0
        %1212 = vmatpush2.bf16.msra.mxu0 0
        %1213 = vmatprep.subr.bf16.mxu0 0
        %1214 = vmatpush2.bf16.msra.mxu0 0
        %1215 = vmatprep.mubr.bf16.mxu0 0
        %1216 = vmatmul.mubr.bf16.gmra.mxu0 %v1172
        %v1217 = vpop.f32.mrf.mxu0
        %v1218 = vadd.f32 0.0, %v1217
        %v1219 = vpop.f32.mrf.mxu0
        %v1220 = vpop.f32.mrf.mxu0
        %v1221 = vadd.f32 0.0, %v1220
        %v1222 = vpop.f32.mrf.mxu0
        %1223 = vmatprep.mubr.bf16.mxu0 0
        %1224 = vmatmul.mubr.bf16.gmra.mxu0 %v1175
        %v1225 = vpop.f32.mrf.mxu0
        %v1226 = vadd.f32 0.0, %v1225
        %v1227 = vpop.f32.mrf.mxu0
        %v1228 = vpop.f32.mrf.mxu0
        %v1229 = vpop.f32.mrf.mxu0
        %1230 = vdwg.mxu0
        %1231 = vrot.lane.b32.xlu0 %v1051, 120
        %v1232 = vpop.permute.xlu0 %1231
        %1233 = vrot.lane.b32.xlu0 %v1052, 120
        %v1234 = vpop.permute.xlu0 %1233
        %1235 = vrot.lane.b32.xlu0 %v1051, 88
        %v1236 = vpop.permute.xlu0 %1235
        %1237 = vrot.lane.b32.xlu0 %v1052, 88
        %v1238 = vpop.permute.xlu0 %1237
        %v1240 = vsel %vm1059, %v1232, 0
        %v1243 = vsel %vm1059, %v1234, 0
        %v1246 = vsel %vm1059, %v1236, 0
        %v1249 = vsel %vm1059, %v1238, 0
        %1251 = vmatprep.subr.bf16.mxu0 0
        %1252 = vmatpush1.bf16.xpose.msra.mxu0 0
        %1253 = vmatprep.subr.bf16.mxu0 0
        %1254 = vmatpush1.bf16.xpose.msra.mxu0 0
        %1255 = vmatprep.subr.bf16.mxu0 0
        %1256 = vmatpush1.bf16.xpose.msra.mxu0 0
        %1257 = vmatprep.subr.bf16.mxu0 0
        %1258 = vmatpush1.bf16.xpose.msra.mxu0 0
        %1259 = vmatprep.subr.bf16.mxu0 0
        %1260 = vmatpush1.bf16.xpose.msra.mxu0 0
        %1261 = vmatprep.subr.bf16.mxu0 0
        %1262 = vmatpush1.bf16.xpose.msra.mxu0 0
        %1263 = vmatprep.subr.bf16.mxu0 0
        %1264 = vmatpush1.bf16.xpose.msra.mxu0 %v1249
        %1265 = vmatprep.subr.bf16.mxu0 0
        %1266 = vmatpush1.bf16.xpose.msra.mxu0 %v1246
        %1267 = vmatprep.subr.bf16.mxu0 0
        %1268 = vmatpush2.bf16.xpose.msra.mxu0 0
        %1269 = vmatprep.subr.bf16.mxu0 0
        %1270 = vmatpush2.bf16.xpose.msra.mxu0 0
        %1271 = vmatprep.subr.bf16.mxu0 0
        %1272 = vmatpush2.bf16.xpose.msra.mxu0 0
        %1273 = vmatprep.subr.bf16.mxu0 0
        %1274 = vmatpush2.bf16.xpose.msra.mxu0 0
        %1275 = vmatprep.subr.bf16.mxu0 0
        %1276 = vmatpush2.bf16.xpose.msra.mxu0 0
        %1277 = vmatprep.subr.bf16.mxu0 0
        %1278 = vmatpush2.bf16.xpose.msra.mxu0 0
        %1279 = vmatprep.subr.bf16.mxu0 0
        %1280 = vmatpush2.bf16.xpose.msra.mxu0 0
        %1281 = vmatprep.subr.bf16.mxu0 0
        %1282 = vmatpush2.bf16.xpose.msra.mxu0 0
        %1283 = vmatprep.mubr.bf16.mxu0 0
        %1284 = vmatmul.mubr.bf16.gmra.mxu0 %v1240
        %v1285 = vpop.f32.mrf.mxu0
        %v1286 = vadd.f32 0.0, %v1285
        %v1287 = vpop.f32.mrf.mxu0
        %v1288 = vpop.f32.mrf.mxu0
        %v1289 = vadd.f32 0.0, %v1288
        %v1290 = vpop.f32.mrf.mxu0
        %1291 = vmatprep.mubr.bf16.mxu0 0
        %1292 = vmatmul.mubr.bf16.gmra.mxu0 %v1243
        %v1293 = vpop.f32.mrf.mxu0
        %v1294 = vadd.f32 0.0, %v1293
        %v1295 = vpop.f32.mrf.mxu0
        %v1296 = vpop.f32.mrf.mxu0
        %v1297 = vpop.f32.mrf.mxu0
        %1298 = vdwg.mxu0
        %v1299 = vsel %vm1120, %v1286, -inf
        %1300 = vmax.xlane.f32.xlu0 %v1299
        %v1301 = vpop.xlane.xlu0 %1300
        %v1302 = vsel %vm1120, %v1289, -inf
        %1303 = vmax.xlane.f32.xlu0 %v1302
        %v1304 = vpop.xlane.xlu0 %1303
        %v1305 = vsel %vm1127, %v1294, -inf
        %1306 = vmax.xlane.f32.xlu0 %v1305
        %v1307 = vpop.xlane.xlu0 %1306
        %v1308 = vsub.f32 %v1286, %v1301
        %v1309 = vsub.f32 %v1289, %v1304
        %v1310 = vsub.f32 %v1294, %v1307
        %v1311 = vmul.f32 %v1308, 1.442695
        %v1312 = vpow.pop %v1311
        %v1313 = vmul.f32 %v1309, 1.442695
        %v1314 = vpow.pop %v1313
        %v1315 = vmul.f32 %v1310, 1.442695
        %v1316 = vpow.pop %v1315
        %v1317 = vsel %vm1120, %v1312, 0.0
        %1318 = vadd.xlane.f32.xlu0 %v1317
        %v1319 = vpop.xlane.xlu0 %1318
        %v1320 = vsel %vm1120, %v1314, 0.0
        %1321 = vadd.xlane.f32.xlu0 %v1320
        %v1322 = vpop.xlane.xlu0 %1321
        %v1323 = vsel %vm1127, %v1316, 0.0
        %1324 = vadd.xlane.f32.xlu0 %v1323
        %v1325 = vpop.xlane.xlu0 %1324
        %v1326 = vrcp.pop %v1319
        %v1327 = vrcp.pop %v1322
        %v1328 = vrcp.pop %v1325
        %v1329 = vmul.f32 %v1319, %v1326
        %v1330 = vmul.f32 %v1322, %v1327
        %v1331 = vmul.f32 %v1325, %v1328
        %v1332 = vsub.f32 2.0, %v1329
        %v1333 = vsub.f32 2.0, %v1330
        %v1334 = vsub.f32 2.0, %v1331
        %v1335 = vmul.f32 %v1326, %v1332
        %v1336 = vmul.f32 %v1327, %v1333
        %v1337 = vmul.f32 %v1328, %v1334
        %v1338 = vmul.f32 %v1312, %v1335
        %v1339 = vmul.f32 %v1314, %v1336
        %v1340 = vmul.f32 %v1316, %v1337
        %v1341 = vpack.c.bf16 %v1339, %v1338
        %v1342 = vpack.c.bf16 %v1340, %v1340
        %1343 = vrot.lane.b32.xlu0 %v1051, 56
        %v1344 = vpop.permute.xlu0 %1343
        %1345 = vrot.lane.b32.xlu0 %v1052, 56
        %v1346 = vpop.permute.xlu0 %1345
        %v1349 = vsel %vm1120, %v1341, 0
        %v1352 = vsel %vm1120, %v1342, 0
        %v1355 = vand.u32 %v1346, %v1179
        %1357 = vmatprep.subr.bf16.mxu0 0
        %1358 = vmatpush1.bf16.msra.mxu0 0
        %1359 = vmatprep.subr.bf16.mxu0 0
        %1360 = vmatpush1.bf16.msra.mxu0 0
        %1361 = vmatprep.subr.bf16.mxu0 0
        %1362 = vmatpush1.bf16.msra.mxu0 0
        %1363 = vmatprep.subr.bf16.mxu0 0
        %1364 = vmatpush1.bf16.msra.mxu0 0
        %1365 = vmatprep.subr.bf16.mxu0 0
        %1366 = vmatpush1.bf16.msra.mxu0 0
        %1367 = vmatprep.subr.bf16.mxu0 0
        %1368 = vmatpush1.bf16.msra.mxu0 0
        %1369 = vmatprep.subr.bf16.mxu0 0
        %1370 = vmatpush1.bf16.msra.mxu0 %v1355
        %1371 = vmatprep.subr.bf16.mxu0 0
        %1372 = vmatpush1.bf16.msra.mxu0 %v1344
        %1373 = vmatprep.subr.bf16.mxu0 0
        %1374 = vmatpush2.bf16.msra.mxu0 0
        %1375 = vmatprep.subr.bf16.mxu0 0
        %1376 = vmatpush2.bf16.msra.mxu0 0
        %1377 = vmatprep.subr.bf16.mxu0 0
        %1378 = vmatpush2.bf16.msra.mxu0 0
        %1379 = vmatprep.subr.bf16.mxu0 0
        %1380 = vmatpush2.bf16.msra.mxu0 0
        %1381 = vmatprep.subr.bf16.mxu0 0
        %1382 = vmatpush2.bf16.msra.mxu0 0
        %1383 = vmatprep.subr.bf16.mxu0 0
        %1384 = vmatpush2.bf16.msra.mxu0 0
        %1385 = vmatprep.subr.bf16.mxu0 0
        %1386 = vmatpush2.bf16.msra.mxu0 0
        %1387 = vmatprep.subr.bf16.mxu0 0
        %1388 = vmatpush2.bf16.msra.mxu0 0
        %1389 = vmatprep.mubr.bf16.mxu0 0
        %1390 = vmatmul.mubr.bf16.gmra.mxu0 %v1349
        %v1391 = vpop.f32.mrf.mxu0
        %v1392 = vadd.f32 0.0, %v1391
        %v1393 = vpop.f32.mrf.mxu0
        %v1394 = vpop.f32.mrf.mxu0
        %v1395 = vadd.f32 0.0, %v1394
        %v1396 = vpop.f32.mrf.mxu0
        %1397 = vmatprep.mubr.bf16.mxu0 0
        %1398 = vmatmul.mubr.bf16.gmra.mxu0 %v1352
        %v1399 = vpop.f32.mrf.mxu0
        %v1400 = vadd.f32 0.0, %v1399
        %v1401 = vpop.f32.mrf.mxu0
        %v1402 = vpop.f32.mrf.mxu0
        %v1403 = vpop.f32.mrf.mxu0
        %1404 = vdwg.mxu0
        %1405 = vrot.lane.b32.xlu0 %v1051, 112
        %v1406 = vpop.permute.xlu0 %1405
        %1407 = vrot.lane.b32.xlu0 %v1052, 112
        %v1408 = vpop.permute.xlu0 %1407
        %1409 = vrot.lane.b32.xlu0 %v1051, 80
        %v1410 = vpop.permute.xlu0 %1409
        %1411 = vrot.lane.b32.xlu0 %v1052, 80
        %v1412 = vpop.permute.xlu0 %1411
        %v1414 = vsel %vm1059, %v1406, 0
        %v1417 = vsel %vm1059, %v1408, 0
        %v1420 = vsel %vm1059, %v1410, 0
        %v1423 = vsel %vm1059, %v1412, 0
        %1425 = vmatprep.subr.bf16.mxu0 0
        %1426 = vmatpush1.bf16.xpose.msra.mxu0 0
        %1427 = vmatprep.subr.bf16.mxu0 0
        %1428 = vmatpush1.bf16.xpose.msra.mxu0 0
        %1429 = vmatprep.subr.bf16.mxu0 0
        %1430 = vmatpush1.bf16.xpose.msra.mxu0 0
        %1431 = vmatprep.subr.bf16.mxu0 0
        %1432 = vmatpush1.bf16.xpose.msra.mxu0 0
        %1433 = vmatprep.subr.bf16.mxu0 0
        %1434 = vmatpush1.bf16.xpose.msra.mxu0 0
        %1435 = vmatprep.subr.bf16.mxu0 0
        %1436 = vmatpush1.bf16.xpose.msra.mxu0 0
        %1437 = vmatprep.subr.bf16.mxu0 0
        %1438 = vmatpush1.bf16.xpose.msra.mxu0 %v1423
        %1439 = vmatprep.subr.bf16.mxu0 0
        %1440 = vmatpush1.bf16.xpose.msra.mxu0 %v1420
        %1441 = vmatprep.subr.bf16.mxu0 0
        %1442 = vmatpush2.bf16.xpose.msra.mxu0 0
        %1443 = vmatprep.subr.bf16.mxu0 0
        %1444 = vmatpush2.bf16.xpose.msra.mxu0 0
        %1445 = vmatprep.subr.bf16.mxu0 0
        %1446 = vmatpush2.bf16.xpose.msra.mxu0 0
        %1447 = vmatprep.subr.bf16.mxu0 0
        %1448 = vmatpush2.bf16.xpose.msra.mxu0 0
        %1449 = vmatprep.subr.bf16.mxu0 0
        %1450 = vmatpush2.bf16.xpose.msra.mxu0 0
        %1451 = vmatprep.subr.bf16.mxu0 0
        %1452 = vmatpush2.bf16.xpose.msra.mxu0 0
        %1453 = vmatprep.subr.bf16.mxu0 0
        %1454 = vmatpush2.bf16.xpose.msra.mxu0 0
        %1455 = vmatprep.subr.bf16.mxu0 0
        %1456 = vmatpush2.bf16.xpose.msra.mxu0 0
        %1457 = vmatprep.mubr.bf16.mxu0 0
        %1458 = vmatmul.mubr.bf16.gmra.mxu0 %v1414
        %v1459 = vpop.f32.mrf.mxu0
        %v1460 = vadd.f32 0.0, %v1459
        %v1461 = vpop.f32.mrf.mxu0
        %v1462 = vpop.f32.mrf.mxu0
        %v1463 = vadd.f32 0.0, %v1462
        %v1464 = vpop.f32.mrf.mxu0
        %1465 = vmatprep.mubr.bf16.mxu0 0
        %1466 = vmatmul.mubr.bf16.gmra.mxu0 %v1417
        %v1467 = vpop.f32.mrf.mxu0
        %v1468 = vadd.f32 0.0, %v1467
        %v1469 = vpop.f32.mrf.mxu0
        %v1470 = vpop.f32.mrf.mxu0
        %v1471 = vpop.f32.mrf.mxu0
        %1472 = vdwg.mxu0
        %v1473 = vsel %vm1120, %v1460, -inf
        %1474 = vmax.xlane.f32.xlu0 %v1473
        %v1475 = vpop.xlane.xlu0 %1474
        %v1476 = vsel %vm1120, %v1463, -inf
        %1477 = vmax.xlane.f32.xlu0 %v1476
        %v1478 = vpop.xlane.xlu0 %1477
        %v1479 = vsel %vm1127, %v1468, -inf
        %1480 = vmax.xlane.f32.xlu0 %v1479
        %v1481 = vpop.xlane.xlu0 %1480
        %v1482 = vsub.f32 %v1460, %v1475
        %v1483 = vsub.f32 %v1463, %v1478
        %v1484 = vsub.f32 %v1468, %v1481
        %v1485 = vmul.f32 %v1482, 1.442695
        %v1486 = vpow.pop %v1485
        %v1487 = vmul.f32 %v1483, 1.442695
        %v1488 = vpow.pop %v1487
        %v1489 = vmul.f32 %v1484, 1.442695
        %v1490 = vpow.pop %v1489
        %v1491 = vsel %vm1120, %v1486, 0.0
        %1492 = vadd.xlane.f32.xlu0 %v1491
        %v1493 = vpop.xlane.xlu0 %1492
        %v1494 = vsel %vm1120, %v1488, 0.0
        %1495 = vadd.xlane.f32.xlu0 %v1494
        %v1496 = vpop.xlane.xlu0 %1495
        %v1497 = vsel %vm1127, %v1490, 0.0
        %1498 = vadd.xlane.f32.xlu0 %v1497
        %v1499 = vpop.xlane.xlu0 %1498
        %v1500 = vrcp.pop %v1493
        %v1501 = vrcp.pop %v1496
        %v1502 = vrcp.pop %v1499
        %v1503 = vmul.f32 %v1493, %v1500
        %v1504 = vmul.f32 %v1496, %v1501
        %v1505 = vmul.f32 %v1499, %v1502
        %v1506 = vsub.f32 2.0, %v1503
        %v1507 = vsub.f32 2.0, %v1504
        %v1508 = vsub.f32 2.0, %v1505
        %v1509 = vmul.f32 %v1500, %v1506
        %v1510 = vmul.f32 %v1501, %v1507
        %v1511 = vmul.f32 %v1502, %v1508
        %v1512 = vmul.f32 %v1486, %v1509
        %v1513 = vmul.f32 %v1488, %v1510
        %v1514 = vmul.f32 %v1490, %v1511
        %v1515 = vpack.c.bf16 %v1513, %v1512
        %v1516 = vpack.c.bf16 %v1514, %v1514
        %1517 = vrot.lane.b32.xlu0 %v1051, 48
        %v1518 = vpop.permute.xlu0 %1517
        %1519 = vrot.lane.b32.xlu0 %v1052, 48
        %v1520 = vpop.permute.xlu0 %1519
        %v1523 = vsel %vm1120, %v1515, 0
        %v1526 = vsel %vm1120, %v1516, 0
        %v1529 = vand.u32 %v1520, %v1179
        %1531 = vmatprep.subr.bf16.mxu0 0
        %1532 = vmatpush1.bf16.msra.mxu0 0
        %1533 = vmatprep.subr.bf16.mxu0 0
        %1534 = vmatpush1.bf16.msra.mxu0 0
        %1535 = vmatprep.subr.bf16.mxu0 0
        %1536 = vmatpush1.bf16.msra.mxu0 0
        %1537 = vmatprep.subr.bf16.mxu0 0
        %1538 = vmatpush1.bf16.msra.mxu0 0
        %1539 = vmatprep.subr.bf16.mxu0 0
        %1540 = vmatpush1.bf16.msra.mxu0 0
        %1541 = vmatprep.subr.bf16.mxu0 0
        %1542 = vmatpush1.bf16.msra.mxu0 0
        %1543 = vmatprep.subr.bf16.mxu0 0
        %1544 = vmatpush1.bf16.msra.mxu0 %v1529
        %1545 = vmatprep.subr.bf16.mxu0 0
        %1546 = vmatpush1.bf16.msra.mxu0 %v1518
        %1547 = vmatprep.subr.bf16.mxu0 0
        %1548 = vmatpush2.bf16.msra.mxu0 0
        %1549 = vmatprep.subr.bf16.mxu0 0
        %1550 = vmatpush2.bf16.msra.mxu0 0
        %1551 = vmatprep.subr.bf16.mxu0 0
        %1552 = vmatpush2.bf16.msra.mxu0 0
        %1553 = vmatprep.subr.bf16.mxu0 0
        %1554 = vmatpush2.bf16.msra.mxu0 0
        %1555 = vmatprep.subr.bf16.mxu0 0
        %1556 = vmatpush2.bf16.msra.mxu0 0
        %1557 = vmatprep.subr.bf16.mxu0 0
        %1558 = vmatpush2.bf16.msra.mxu0 0
        %1559 = vmatprep.subr.bf16.mxu0 0
        %1560 = vmatpush2.bf16.msra.mxu0 0
        %1561 = vmatprep.subr.bf16.mxu0 0
        %1562 = vmatpush2.bf16.msra.mxu0 0
        %1563 = vmatprep.mubr.bf16.mxu0 0
        %1564 = vmatmul.mubr.bf16.gmra.mxu0 %v1523
        %v1565 = vpop.f32.mrf.mxu0
        %v1566 = vadd.f32 0.0, %v1565
        %v1567 = vpop.f32.mrf.mxu0
        %v1568 = vpop.f32.mrf.mxu0
        %v1569 = vadd.f32 0.0, %v1568
        %v1570 = vpop.f32.mrf.mxu0
        %1571 = vmatprep.mubr.bf16.mxu0 0
        %1572 = vmatmul.mubr.bf16.gmra.mxu0 %v1526
        %v1573 = vpop.f32.mrf.mxu0
        %v1574 = vadd.f32 0.0, %v1573
        %v1575 = vpop.f32.mrf.mxu0
        %v1576 = vpop.f32.mrf.mxu0
        %v1577 = vpop.f32.mrf.mxu0
        %1578 = vdwg.mxu0
        %1579 = vrot.lane.b32.xlu0 %v1051, 104
        %v1580 = vpop.permute.xlu0 %1579
        %1581 = vrot.lane.b32.xlu0 %v1052, 104
        %v1582 = vpop.permute.xlu0 %1581
        %1583 = vrot.lane.b32.xlu0 %v1051, 72
        %v1584 = vpop.permute.xlu0 %1583
        %1585 = vrot.lane.b32.xlu0 %v1052, 72
        %v1586 = vpop.permute.xlu0 %1585
        %v1588 = vsel %vm1059, %v1580, 0
        %v1591 = vsel %vm1059, %v1582, 0
        %v1594 = vsel %vm1059, %v1584, 0
        %v1597 = vsel %vm1059, %v1586, 0
        %1599 = vmatprep.subr.bf16.mxu0 0
        %1600 = vmatpush1.bf16.xpose.msra.mxu0 0
        %1601 = vmatprep.subr.bf16.mxu0 0
        %1602 = vmatpush1.bf16.xpose.msra.mxu0 0
        %1603 = vmatprep.subr.bf16.mxu0 0
        %1604 = vmatpush1.bf16.xpose.msra.mxu0 0
        %1605 = vmatprep.subr.bf16.mxu0 0
        %1606 = vmatpush1.bf16.xpose.msra.mxu0 0
        %1607 = vmatprep.subr.bf16.mxu0 0
        %1608 = vmatpush1.bf16.xpose.msra.mxu0 0
        %1609 = vmatprep.subr.bf16.mxu0 0
        %1610 = vmatpush1.bf16.xpose.msra.mxu0 0
        %1611 = vmatprep.subr.bf16.mxu0 0
        %1612 = vmatpush1.bf16.xpose.msra.mxu0 %v1597
        %1613 = vmatprep.subr.bf16.mxu0 0
        %1614 = vmatpush1.bf16.xpose.msra.mxu0 %v1594
        %1615 = vmatprep.subr.bf16.mxu0 0
        %1616 = vmatpush2.bf16.xpose.msra.mxu0 0
        %1617 = vmatprep.subr.bf16.mxu0 0
        %1618 = vmatpush2.bf16.xpose.msra.mxu0 0
        %1619 = vmatprep.subr.bf16.mxu0 0
        %1620 = vmatpush2.bf16.xpose.msra.mxu0 0
        %1621 = vmatprep.subr.bf16.mxu0 0
        %1622 = vmatpush2.bf16.xpose.msra.mxu0 0
        %1623 = vmatprep.subr.bf16.mxu0 0
        %1624 = vmatpush2.bf16.xpose.msra.mxu0 0
        %1625 = vmatprep.subr.bf16.mxu0 0
        %1626 = vmatpush2.bf16.xpose.msra.mxu0 0
        %1627 = vmatprep.subr.bf16.mxu0 0
        %1628 = vmatpush2.bf16.xpose.msra.mxu0 0
        %1629 = vmatprep.subr.bf16.mxu0 0
        %1630 = vmatpush2.bf16.xpose.msra.mxu0 0
        %1631 = vmatprep.mubr.bf16.mxu0 0
        %1632 = vmatmul.mubr.bf16.gmra.mxu0 %v1588
        %v1633 = vpop.f32.mrf.mxu0
        %v1634 = vadd.f32 0.0, %v1633
        %v1635 = vpop.f32.mrf.mxu0
        %v1636 = vpop.f32.mrf.mxu0
        %v1637 = vadd.f32 0.0, %v1636
        %v1638 = vpop.f32.mrf.mxu0
        %1639 = vmatprep.mubr.bf16.mxu0 0
        %1640 = vmatmul.mubr.bf16.gmra.mxu0 %v1591
        %v1641 = vpop.f32.mrf.mxu0
        %v1642 = vadd.f32 0.0, %v1641
        %v1643 = vpop.f32.mrf.mxu0
        %v1644 = vpop.f32.mrf.mxu0
        %v1645 = vpop.f32.mrf.mxu0
        %1646 = vdwg.mxu0
        %v1647 = vsel %vm1120, %v1634, -inf
        %1648 = vmax.xlane.f32.xlu0 %v1647
        %v1649 = vpop.xlane.xlu0 %1648
        %v1650 = vsel %vm1120, %v1637, -inf
        %1651 = vmax.xlane.f32.xlu0 %v1650
        %v1652 = vpop.xlane.xlu0 %1651
        %v1653 = vsel %vm1127, %v1642, -inf
        %1654 = vmax.xlane.f32.xlu0 %v1653
        %v1655 = vpop.xlane.xlu0 %1654
        %v1656 = vsub.f32 %v1634, %v1649
        %v1657 = vsub.f32 %v1637, %v1652
        %v1658 = vsub.f32 %v1642, %v1655
        %v1659 = vmul.f32 %v1656, 1.442695
        %v1660 = vpow.pop %v1659
        %v1661 = vmul.f32 %v1657, 1.442695
        %v1662 = vpow.pop %v1661
        %v1663 = vmul.f32 %v1658, 1.442695
        %v1664 = vpow.pop %v1663
        %v1665 = vsel %vm1120, %v1660, 0.0
        %1666 = vadd.xlane.f32.xlu0 %v1665
        %v1667 = vpop.xlane.xlu0 %1666
        %v1668 = vsel %vm1120, %v1662, 0.0
        %1669 = vadd.xlane.f32.xlu0 %v1668
        %v1670 = vpop.xlane.xlu0 %1669
        %v1671 = vsel %vm1127, %v1664, 0.0
        %1672 = vadd.xlane.f32.xlu0 %v1671
        %v1673 = vpop.xlane.xlu0 %1672
        %v1674 = vrcp.pop %v1667
        %v1675 = vrcp.pop %v1670
        %v1676 = vrcp.pop %v1673
        %v1677 = vmul.f32 %v1667, %v1674
        %v1678 = vmul.f32 %v1670, %v1675
        %v1679 = vmul.f32 %v1673, %v1676
        %v1680 = vsub.f32 2.0, %v1677
        %v1681 = vsub.f32 2.0, %v1678
        %v1682 = vsub.f32 2.0, %v1679
        %v1683 = vmul.f32 %v1674, %v1680
        %v1684 = vmul.f32 %v1675, %v1681
        %v1685 = vmul.f32 %v1676, %v1682
        %v1686 = vmul.f32 %v1660, %v1683
        %v1687 = vmul.f32 %v1662, %v1684
        %v1688 = vmul.f32 %v1664, %v1685
        %v1689 = vpack.c.bf16 %v1687, %v1686
        %v1690 = vpack.c.bf16 %v1688, %v1688
        %1691 = vrot.lane.b32.xlu0 %v1051, 40
        %v1692 = vpop.permute.xlu0 %1691
        %1693 = vrot.lane.b32.xlu0 %v1052, 40
        %v1694 = vpop.permute.xlu0 %1693
        %v1697 = vsel %vm1120, %v1689, 0
        %v1700 = vsel %vm1120, %v1690, 0
        %v1703 = vand.u32 %v1694, %v1179
        %1705 = vmatprep.subr.bf16.mxu0 0
        %1706 = vmatpush1.bf16.msra.mxu0 0
        %1707 = vmatprep.subr.bf16.mxu0 0
        %1708 = vmatpush1.bf16.msra.mxu0 0
        %1709 = vmatprep.subr.bf16.mxu0 0
        %1710 = vmatpush1.bf16.msra.mxu0 0
        %1711 = vmatprep.subr.bf16.mxu0 0
        %1712 = vmatpush1.bf16.msra.mxu0 0
        %1713 = vmatprep.subr.bf16.mxu0 0
        %1714 = vmatpush1.bf16.msra.mxu0 0
        %1715 = vmatprep.subr.bf16.mxu0 0
        %1716 = vmatpush1.bf16.msra.mxu0 0
        %1717 = vmatprep.subr.bf16.mxu0 0
        %1718 = vmatpush1.bf16.msra.mxu0 %v1703
        %1719 = vmatprep.subr.bf16.mxu0 0
        %1720 = vmatpush1.bf16.msra.mxu0 %v1692
        %1721 = vmatprep.subr.bf16.mxu0 0
        %1722 = vmatpush2.bf16.msra.mxu0 0
        %1723 = vmatprep.subr.bf16.mxu0 0
        %1724 = vmatpush2.bf16.msra.mxu0 0
        %1725 = vmatprep.subr.bf16.mxu0 0
        %1726 = vmatpush2.bf16.msra.mxu0 0
        %1727 = vmatprep.subr.bf16.mxu0 0
        %1728 = vmatpush2.bf16.msra.mxu0 0
        %1729 = vmatprep.subr.bf16.mxu0 0
        %1730 = vmatpush2.bf16.msra.mxu0 0
        %1731 = vmatprep.subr.bf16.mxu0 0
        %1732 = vmatpush2.bf16.msra.mxu0 0
        %1733 = vmatprep.subr.bf16.mxu0 0
        %1734 = vmatpush2.bf16.msra.mxu0 0
        %1735 = vmatprep.subr.bf16.mxu0 0
        %1736 = vmatpush2.bf16.msra.mxu0 0
        %1737 = vmatprep.mubr.bf16.mxu0 0
        %1738 = vmatmul.mubr.bf16.gmra.mxu0 %v1697
        %v1739 = vpop.f32.mrf.mxu0
        %v1740 = vadd.f32 0.0, %v1739
        %v1741 = vpop.f32.mrf.mxu0
        %v1742 = vpop.f32.mrf.mxu0
        %v1743 = vadd.f32 0.0, %v1742
        %v1744 = vpop.f32.mrf.mxu0
        %1745 = vmatprep.mubr.bf16.mxu0 0
        %1746 = vmatmul.mubr.bf16.gmra.mxu0 %v1700
        %v1747 = vpop.f32.mrf.mxu0
        %v1748 = vadd.f32 0.0, %v1747
        %v1749 = vpop.f32.mrf.mxu0
        %v1750 = vpop.f32.mrf.mxu0
        %v1751 = vpop.f32.mrf.mxu0
        %1752 = vdwg.mxu0
        %1756 = vrot.lane.b32.xlu0 %v1392, 8
        %v1757 = vpop.permute.xlu0 %1756
        %1758 = vrot.lane.b32.xlu0 %v1395, 8
        %v1759 = vpop.permute.xlu0 %1758
        %1760 = vrot.lane.b32.xlu0 %v1400, 8
        %v1761 = vpop.permute.xlu0 %1760
        %1768 = vrot.lane.b32.xlu0 %v1566, 16
        %v1769 = vpop.permute.xlu0 %1768
        %1770 = vrot.lane.b32.xlu0 %v1569, 16
        %v1771 = vpop.permute.xlu0 %1770
        %1772 = vrot.lane.b32.xlu0 %v1574, 16
        %v1773 = vpop.permute.xlu0 %1772
        %1780 = vrot.lane.b32.xlu0 %v1740, 24
        %v1781 = vpop.permute.xlu0 %1780
        %1782 = vrot.lane.b32.xlu0 %v1743, 24
        %v1783 = vpop.permute.xlu0 %1782
        %1784 = vrot.lane.b32.xlu0 %v1748, 24
        %v1785 = vpop.permute.xlu0 %1784
        %v1789 = vsel %vm1059, %v1218, %v1757
        %v1790 = vsel %vm1059, %v1221, %v1759
        %v1791 = vsel %vm1059, %v1226, %v1761
        %vm1792 = vcmask 130048
        %v1793 = vsel %vm1792, %v1789, %v1769
        %v1794 = vsel %vm1792, %v1790, %v1771
        %v1795 = vsel %vm1792, %v1791, %v1773
        %vm1796 = vcmask 195584
        %v1797 = vsel %vm1796, %v1793, %v1781
        %v1798 = vsel %vm1796, %v1794, %v1783
        %v1799 = vsel %vm1796, %v1795, %v1785
        %v1800 = vpack.c.bf16 %v1798, %v1797
        %v1801 = vpack.c.bf16 %v1799, %v1799
        %v1802 = vld [vmem:[%s718] sm:$0xf]
        %v1803 = vld [vmem:[%s718 + $0x4] sm:$0xf]
        %v1804 = vld [vmem:[%s718 + $0x8] sm:$0xf]
        %v1805 = vld [vmem:[%s718 + $0xc] sm:$0xf]
        %v1806 = vld [vmem:[%s721] sm:$0x1]
        %v1808 = vlaneseq
        %v1809 = vshrl.u32 %v1808, 7
        %v1810 = vsub.s32 0, %v1809
        %v1811 = vrot.slane %v1806, %v1810
        %v1817 = vunpack.c.l.b16 %v1802
        %v1818 = vunpack.c.l.b16 %v1803
        %v1819 = vunpack.c.l.b16 %v1804
        %v1820 = vunpack.c.l.b16 %v1805
        %v1821 = vpack.c.b16 %v1818, %v1817
        %v1822 = vpack.c.b16 %v1820, %v1819
        %v1826 = vsel %vm912, %v1800, 0
        %v1829 = vsel %vm912, %v1801, 0
        %1831 = vmatprep.subr.bf16.mxu0 0
        %1832 = vmatpush1.bf16.msra.mxu0 0
        %1833 = vmatprep.subr.bf16.mxu0 0
        %1834 = vmatpush1.bf16.msra.mxu0 0
        %1835 = vmatprep.subr.bf16.mxu0 0
        %1836 = vmatpush1.bf16.msra.mxu0 0
        %1837 = vmatprep.subr.bf16.mxu0 0
        %1838 = vmatpush1.bf16.msra.mxu0 0
        %1839 = vmatprep.subr.bf16.mxu0 0
        %1840 = vmatpush1.bf16.msra.mxu0 0
        %1841 = vmatprep.subr.bf16.mxu0 0
        %1842 = vmatpush1.bf16.msra.mxu0 0
        %1843 = vmatprep.subr.bf16.mxu0 0
        %1844 = vmatpush1.bf16.msra.mxu0 %v1822
        %1845 = vmatprep.subr.bf16.mxu0 0
        %1846 = vmatpush1.bf16.msra.mxu0 %v1821
        %1847 = vmatprep.subr.bf16.mxu0 0
        %1848 = vmatpush2.bf16.msra.mxu0 0
        %1849 = vmatprep.subr.bf16.mxu0 0
        %1850 = vmatpush2.bf16.msra.mxu0 0
        %1851 = vmatprep.subr.bf16.mxu0 0
        %1852 = vmatpush2.bf16.msra.mxu0 0
        %1853 = vmatprep.subr.bf16.mxu0 0
        %1854 = vmatpush2.bf16.msra.mxu0 0
        %1855 = vmatprep.subr.bf16.mxu0 0
        %1856 = vmatpush2.bf16.msra.mxu0 0
        %1857 = vmatprep.subr.bf16.mxu0 0
        %1858 = vmatpush2.bf16.msra.mxu0 0
        %1859 = vmatprep.subr.bf16.mxu0 0
        %1860 = vmatpush2.bf16.msra.mxu0 0
        %1861 = vmatprep.subr.bf16.mxu0 0
        %1862 = vmatpush2.bf16.msra.mxu0 0
        %1863 = vmatprep.mubr.bf16.mxu0 0
        %1864 = vmatmul.mubr.bf16.gmra.mxu0 %v1826
        %v1865 = vpop.f32.mrf.mxu0
        %v1866 = vadd.f32 %v1811, %v1865
        %v1867 = vpop.f32.mrf.mxu0
        %v1868 = vpop.f32.mrf.mxu0
        %v1869 = vadd.f32 %v1811, %v1868
        %v1870 = vpop.f32.mrf.mxu0
        %1871 = vmatprep.mubr.bf16.mxu0 0
        %1872 = vmatmul.mubr.bf16.gmra.mxu0 %v1829
        %v1873 = vpop.f32.mrf.mxu0
        %v1874 = vadd.f32 %v1811, %v1873
        %v1875 = vpop.f32.mrf.mxu0
        %v1876 = vpop.f32.mrf.mxu0
        %v1877 = vpop.f32.mrf.mxu0
        %1878 = vdwg.mxu0
        %v1879 = vadd.f32 %v907, %v1866
        %v1880 = vadd.f32 %v908, %v1869
        %v1881 = vadd.f32 %v909, %v1874
        %v1882 = vld [vmem:[%s730] sm:$0x1]
        %v1883 = vld [vmem:[%s733] sm:$0x1]
        %v1884 = vsel %vm912, %v1879, 0.0
        %1885 = vadd.xlane.f32.xlu0 %v1884
        %v1886 = vpop.xlane.xlu0 %1885
        %v1887 = vsel %vm912, %v1880, 0.0
        %1888 = vadd.xlane.f32.xlu0 %v1887
        %v1889 = vpop.xlane.xlu0 %1888
        %v1890 = vsel %vm919, %v1881, 0.0
        %1891 = vadd.xlane.f32.xlu0 %v1890
        %v1892 = vpop.xlane.xlu0 %1891
        %v1893 = vmul.f32 %v1886, %v923
        %v1894 = vmul.f32 %v1889, %v923
        %v1895 = vmul.f32 %v1892, %v923
        %v1896 = vsub.f32 %v1879, %v1893
        %v1897 = vsub.f32 %v1880, %v1894
        %v1898 = vsub.f32 %v1881, %v1895
        %v1899 = vmul.f32 %v1896, %v1896
        %v1900 = vmul.f32 %v1897, %v1897
        %v1901 = vmul.f32 %v1898, %v1898
        %v1902 = vsel %vm912, %v1899, 0.0
        %1903 = vadd.xlane.f32.xlu0 %v1902
        %v1904 = vpop.xlane.xlu0 %1903
        %v1905 = vsel %vm912, %v1900, 0.0
        %1906 = vadd.xlane.f32.xlu0 %v1905
        %v1907 = vpop.xlane.xlu0 %1906
        %v1908 = vsel %vm919, %v1901, 0.0
        %1909 = vadd.xlane.f32.xlu0 %v1908
        %v1910 = vpop.xlane.xlu0 %1909
        %v1911 = vmul.f32 %v1904, %v923
        %v1912 = vmul.f32 %v1907, %v923
        %v1913 = vmul.f32 %v1910, %v923
        %v1914 = vadd.f32 %v1911, 1e-05
        %v1915 = vadd.f32 %v1912, 1e-05
        %v1916 = vadd.f32 %v1913, 1e-05
        %v1917 = vrsqrt.pop %v1914
        %v1918 = vrsqrt.pop %v1915
        %v1919 = vrsqrt.pop %v1916
        %v1920 = vmul.f32 %v1896, %v1917
        %v1921 = vmul.f32 %v1897, %v1918
        %v1922 = vmul.f32 %v1898, %v1919
        %v1924 = vlaneseq
        %v1925 = vshrl.u32 %v1924, 7
        %v1926 = vsub.s32 0, %v1925
        %v1927 = vrot.slane %v1882, %v1926
        %v1929 = vmul.f32 %v1920, %v1927
        %v1930 = vmul.f32 %v1921, %v1927
        %v1931 = vmul.f32 %v1922, %v1927
        %v1933 = vlaneseq
        %v1934 = vshrl.u32 %v1933, 7
        %v1935 = vsub.s32 0, %v1934
        %v1936 = vrot.slane %v1883, %v1935
        %v1938 = vadd.f32 %v1929, %v1936
        %v1939 = vadd.f32 %v1930, %v1936
        %v1940 = vadd.f32 %v1931, %v1936
        %v1941 = vpack.c.bf16 %v1939, %v1938
        %v1942 = vpack.c.bf16 %v1940, %v1940
        %v1943 = vld [vmem:[%s738] sm:$0xf]
        %v1944 = vld [vmem:[%s738 + $0x4] sm:$0xf]
        %v1945 = vld [vmem:[%s738 + $0x8] sm:$0xf]
        %v1946 = vld [vmem:[%s738 + $0xc] sm:$0xf]
        %v1947 = vld [vmem:[%s741] sm:$0x1]
        %v1949 = vlaneseq
        %v1950 = vshrl.u32 %v1949, 7
        %v1951 = vsub.s32 0, %v1950
        %v1952 = vrot.slane %v1947, %v1951
        %v1958 = vunpack.c.l.b16 %v1943
        %v1959 = vunpack.c.l.b16 %v1944
        %v1960 = vunpack.c.l.b16 %v1945
        %v1961 = vunpack.c.l.b16 %v1946
        %v1962 = vpack.c.b16 %v1959, %v1958
        %v1963 = vpack.c.b16 %v1961, %v1960
        %v1967 = vsel %vm912, %v1941, 0
        %v1970 = vsel %vm912, %v1942, 0
        %1972 = vmatprep.subr.bf16.mxu0 0
        %1973 = vmatpush1.bf16.msra.mxu0 0
        %1974 = vmatprep.subr.bf16.mxu0 0
        %1975 = vmatpush1.bf16.msra.mxu0 0
        %1976 = vmatprep.subr.bf16.mxu0 0
        %1977 = vmatpush1.bf16.msra.mxu0 0
        %1978 = vmatprep.subr.bf16.mxu0 0
        %1979 = vmatpush1.bf16.msra.mxu0 0
        %1980 = vmatprep.subr.bf16.mxu0 0
        %1981 = vmatpush1.bf16.msra.mxu0 0
        %1982 = vmatprep.subr.bf16.mxu0 0
        %1983 = vmatpush1.bf16.msra.mxu0 0
        %1984 = vmatprep.subr.bf16.mxu0 0
        %1985 = vmatpush1.bf16.msra.mxu0 %v1963
        %1986 = vmatprep.subr.bf16.mxu0 0
        %1987 = vmatpush1.bf16.msra.mxu0 %v1962
        %1988 = vmatprep.subr.bf16.mxu0 0
        %1989 = vmatpush2.bf16.msra.mxu0 0
        %1990 = vmatprep.subr.bf16.mxu0 0
        %1991 = vmatpush2.bf16.msra.mxu0 0
        %1992 = vmatprep.subr.bf16.mxu0 0
        %1993 = vmatpush2.bf16.msra.mxu0 0
        %1994 = vmatprep.subr.bf16.mxu0 0
        %1995 = vmatpush2.bf16.msra.mxu0 0
        %1996 = vmatprep.subr.bf16.mxu0 0
        %1997 = vmatpush2.bf16.msra.mxu0 0
        %1998 = vmatprep.subr.bf16.mxu0 0
        %1999 = vmatpush2.bf16.msra.mxu0 0
        %2000 = vmatprep.subr.bf16.mxu0 0
        %2001 = vmatpush2.bf16.msra.mxu0 0
        %2002 = vmatprep.subr.bf16.mxu0 0
        %2003 = vmatpush2.bf16.msra.mxu0 0
        %2004 = vmatprep.mubr.bf16.mxu0 0
        %2005 = vmatmul.mubr.bf16.gmra.mxu0 %v1967
        %v2006 = vpop.f32.mrf.mxu0
        %v2007 = vadd.f32 %v1952, %v2006
        %v2008 = vpop.f32.mrf.mxu0
        %v2009 = vpop.f32.mrf.mxu0
        %v2010 = vadd.f32 %v1952, %v2009
        %v2011 = vpop.f32.mrf.mxu0
        %2012 = vmatprep.mubr.bf16.mxu0 0
        %2013 = vmatmul.mubr.bf16.gmra.mxu0 %v1970
        %v2014 = vpop.f32.mrf.mxu0
        %v2015 = vadd.f32 %v1952, %v2014
        %v2016 = vpop.f32.mrf.mxu0
        %v2017 = vpop.f32.mrf.mxu0
        %v2018 = vpop.f32.mrf.mxu0
        %2019 = vdwg.mxu0
        %v2020 = vmul.f32 %v2007, 0.5
        %v2021 = vmul.f32 %v2010, 0.5
        %v2022 = vmul.f32 %v2015, 0.5
        %v2023 = vmul.f32 %v2007, 0.70710677
        %v2024 = vmul.f32 %v2010, 0.70710677
        %v2025 = vmul.f32 %v2015, 0.70710677
        %vm2026 = vcmp.ge.f32.partialorder %v2023, 0.0
        %vm2027 = vcmp.ge.f32.partialorder %v2024, 0.0
        %vm2028 = vcmp.ge.f32.partialorder %v2025, 0.0
        %v2029 = vsel %vm2026, 1.0, -1.0
        %v2030 = vsel %vm2027, 1.0, -1.0
        %v2031 = vsel %vm2028, 1.0, -1.0
        %v2032 = vand.u32 2147483647, %v2023
        %v2033 = vand.u32 2147483647, %v2024
        %v2034 = vand.u32 2147483647, %v2025
        %v2035 = vmul.f32 %v2032, 0.3275911
        %v2036 = vmul.f32 %v2033, 0.3275911
        %v2037 = vmul.f32 %v2034, 0.3275911
        %v2038 = vadd.f32 %v2035, 1.0
        %v2039 = vadd.f32 %v2036, 1.0
        %v2040 = vadd.f32 %v2037, 1.0
        %v2041 = vrcp.pop %v2038
        %v2042 = vrcp.pop %v2039
        %v2043 = vrcp.pop %v2040
        %v2044 = vmul.f32 %v2038, %v2041
        %v2045 = vmul.f32 %v2039, %v2042
        %v2046 = vmul.f32 %v2040, %v2043
        %v2047 = vsub.f32 2.0, %v2044
        %v2048 = vsub.f32 2.0, %v2045
        %v2049 = vsub.f32 2.0, %v2046
        %v2050 = vmul.f32 %v2041, %v2047
        %v2051 = vmul.f32 %v2042, %v2048
        %v2052 = vmul.f32 %v2043, %v2049
        %v2053 = vmul.f32 %v2050, 1.0614054
        %v2054 = vmul.f32 %v2051, 1.0614054
        %v2055 = vmul.f32 %v2052, 1.0614054
        %v2056 = vadd.f32 %v2053, -1.4531521
        %v2057 = vadd.f32 %v2054, -1.4531521
        %v2058 = vadd.f32 %v2055, -1.4531521
        %v2059 = vmul.f32 %v2056, %v2050
        %v2060 = vmul.f32 %v2057, %v2051
        %v2061 = vmul.f32 %v2058, %v2052
        %v2062 = vadd.f32 %v2059, 1.4214138
        %v2063 = vadd.f32 %v2060, 1.4214138
        %v2064 = vadd.f32 %v2061, 1.4214138
        %v2065 = vmul.f32 %v2062, %v2050
        %v2066 = vmul.f32 %v2063, %v2051
        %v2067 = vmul.f32 %v2064, %v2052
        %v2068 = vadd.f32 %v2065, -0.28449672
        %v2069 = vadd.f32 %v2066, -0.28449672
        %v2070 = vadd.f32 %v2067, -0.28449672
        %v2071 = vmul.f32 %v2068, %v2050
        %v2072 = vmul.f32 %v2069, %v2051
        %v2073 = vmul.f32 %v2070, %v2052
        %v2074 = vadd.f32 %v2071, 0.2548296
        %v2075 = vadd.f32 %v2072, 0.2548296
        %v2076 = vadd.f32 %v2073, 0.2548296
        %v2077 = vmul.f32 %v2074, %v2050
        %v2078 = vmul.f32 %v2075, %v2051
        %v2079 = vmul.f32 %v2076, %v2052
        %v2080 = vsub.f32 0.0, %v2032
        %v2081 = vsub.f32 0.0, %v2033
        %v2082 = vsub.f32 0.0, %v2034
        %v2083 = vmul.f32 %v2080, %v2032
        %v2084 = vmul.f32 %v2081, %v2033
        %v2085 = vmul.f32 %v2082, %v2034
        %v2086 = vmul.f32 %v2083, 1.442695
        %v2087 = vpow.pop %v2086
        %v2088 = vmul.f32 %v2084, 1.442695
        %v2089 = vpow.pop %v2088
        %v2090 = vmul.f32 %v2085, 1.442695
        %v2091 = vpow.pop %v2090
        %v2092 = vmul.f32 %v2077, %v2087
        %v2093 = vmul.f32 %v2078, %v2089
        %v2094 = vmul.f32 %v2079, %v2091
        %v2095 = vsub.f32 1.0, %v2092
        %v2096 = vsub.f32 1.0, %v2093
        %v2097 = vsub.f32 1.0, %v2094
        %v2098 = vmul.f32 %v2029, %v2095
        %v2099 = vmul.f32 %v2030, %v2096
        %v2100 = vmul.f32 %v2031, %v2097
        %v2101 = vadd.f32 %v2098, 1.0
        %v2102 = vadd.f32 %v2099, 1.0
        %v2103 = vadd.f32 %v2100, 1.0
        %v2104 = vmul.f32 %v2020, %v2101
        %v2105 = vmul.f32 %v2021, %v2102
        %v2106 = vmul.f32 %v2022, %v2103
        %v2107 = vpack.c.bf16 %v2105, %v2104
        %v2108 = vpack.c.bf16 %v2106, %v2106
        %v2109 = vld [vmem:[%s746] sm:$0xf]
        %v2110 = vld [vmem:[%s746 + $0x4] sm:$0xf]
        %v2111 = vld [vmem:[%s746 + $0x8] sm:$0xf]
        %v2112 = vld [vmem:[%s746 + $0xc] sm:$0xf]
        %v2113 = vld [vmem:[%s746 + $0x10] sm:$0xf]
        %v2114 = vld [vmem:[%s746 + $0x14] sm:$0xf]
        %v2115 = vld [vmem:[%s746 + $0x18] sm:$0xf]
        %v2116 = vld [vmem:[%s746 + $0x1c] sm:$0xf]
        %v2117 = vld [vmem:[%s746 + $0x20] sm:$0xf]
        %v2118 = vld [vmem:[%s746 + $0x24] sm:$0xf]
        %v2119 = vld [vmem:[%s746 + $0x28] sm:$0xf]
        %v2120 = vld [vmem:[%s746 + $0x2c] sm:$0xf]
        %v2121 = vld [vmem:[%s746 + $0x30] sm:$0xf]
        %v2122 = vld [vmem:[%s746 + $0x34] sm:$0xf]
        %v2123 = vld [vmem:[%s746 + $0x38] sm:$0xf]
        %v2124 = vld [vmem:[%s746 + $0x3c] sm:$0xf]
        %v2125 = vld [vmem:[%s749] sm:$0x1]
        %v2127 = vlaneseq
        %v2128 = vshrl.u32 %v2127, 7
        %v2129 = vsub.s32 0, %v2128
        %v2130 = vrot.slane %v2125, %v2129
        %v2148 = vunpack.c.l.b16 %v2109
        %v2149 = vunpack.c.l.b16 %v2110
        %v2150 = vunpack.c.l.b16 %v2111
        %v2151 = vunpack.c.l.b16 %v2112
        %v2152 = vunpack.c.l.b16 %v2113
        %v2153 = vunpack.c.l.b16 %v2114
        %v2154 = vunpack.c.l.b16 %v2115
        %v2155 = vunpack.c.l.b16 %v2116
        %v2156 = vunpack.c.l.b16 %v2117
        %v2157 = vunpack.c.l.b16 %v2118
        %v2158 = vunpack.c.l.b16 %v2119
        %v2159 = vunpack.c.l.b16 %v2120
        %v2160 = vunpack.c.l.b16 %v2121
        %v2161 = vunpack.c.l.b16 %v2122
        %v2162 = vunpack.c.l.b16 %v2123
        %v2163 = vunpack.c.l.b16 %v2124
        %v2164 = vpack.c.b16 %v2149, %v2148
        %v2165 = vpack.c.b16 %v2151, %v2150
        %v2166 = vpack.c.b16 %v2153, %v2152
        %v2167 = vpack.c.b16 %v2155, %v2154
        %v2168 = vpack.c.b16 %v2157, %v2156
        %v2169 = vpack.c.b16 %v2159, %v2158
        %v2170 = vpack.c.b16 %v2161, %v2160
        %v2171 = vpack.c.b16 %v2163, %v2162
        %2180 = vmatprep.subr.bf16.mxu0 0
        %2181 = vmatpush1.bf16.msra.mxu0 %v2171
        %2182 = vmatprep.subr.bf16.mxu0 0
        %2183 = vmatpush1.bf16.msra.mxu0 %v2170
        %2184 = vmatprep.subr.bf16.mxu0 0
        %2185 = vmatpush1.bf16.msra.mxu0 %v2169
        %2186 = vmatprep.subr.bf16.mxu0 0
        %2187 = vmatpush1.bf16.msra.mxu0 %v2168
        %2188 = vmatprep.subr.bf16.mxu0 0
        %2189 = vmatpush1.bf16.msra.mxu0 %v2167
        %2190 = vmatprep.subr.bf16.mxu0 0
        %2191 = vmatpush1.bf16.msra.mxu0 %v2166
        %2192 = vmatprep.subr.bf16.mxu0 0
        %2193 = vmatpush1.bf16.msra.mxu0 %v2165
        %2194 = vmatprep.subr.bf16.mxu0 0
        %2195 = vmatpush1.bf16.msra.mxu0 %v2164
        %2196 = vmatprep.subr.bf16.mxu0 0
        %2197 = vmatpush2.bf16.msra.mxu0 0
        %2198 = vmatprep.subr.bf16.mxu0 0
        %2199 = vmatpush2.bf16.msra.mxu0 0
        %2200 = vmatprep.subr.bf16.mxu0 0
        %2201 = vmatpush2.bf16.msra.mxu0 0
        %2202 = vmatprep.subr.bf16.mxu0 0
        %2203 = vmatpush2.bf16.msra.mxu0 0
        %2204 = vmatprep.subr.bf16.mxu0 0
        %2205 = vmatpush2.bf16.msra.mxu0 0
        %2206 = vmatprep.subr.bf16.mxu0 0
        %2207 = vmatpush2.bf16.msra.mxu0 0
        %2208 = vmatprep.subr.bf16.mxu0 0
        %2209 = vmatpush2.bf16.msra.mxu0 0
        %2210 = vmatprep.subr.bf16.mxu0 0
        %2211 = vmatpush2.bf16.msra.mxu0 0
        %2212 = vmatprep.mubr.bf16.mxu0 0
        %2213 = vmatmul.mubr.bf16.gmra.mxu0 %v2107
        %v2214 = vpop.f32.mrf.mxu0
        %v2215 = vadd.f32 %v2130, %v2214
        %v2216 = vpop.f32.mrf.mxu0
        %v2217 = vpop.f32.mrf.mxu0
        %v2218 = vadd.f32 %v2130, %v2217
        %v2219 = vpop.f32.mrf.mxu0
        %2220 = vmatprep.mubr.bf16.mxu0 0
        %2221 = vmatmul.mubr.bf16.gmra.mxu0 %v2108
        %v2222 = vpop.f32.mrf.mxu0
        %v2223 = vadd.f32 %v2130, %v2222
        %v2224 = vpop.f32.mrf.mxu0
        %v2225 = vpop.f32.mrf.mxu0
        %v2226 = vpop.f32.mrf.mxu0
        %2227 = vdwg.mxu0
        %v2228 = vadd.f32 %v1879, %v2215
        %v2229 = vadd.f32 %v1880, %v2218
        %v2230 = vadd.f32 %v1881, %v2223
        %2231 = vst.msk [vmem:[#allocation2] sm:$0xff] %vm912, %v2228
        %2232 = vst.msk [vmem:[#allocation2 + $0x8] sm:$0xff] %vm912, %v2229
        %2233 = vst.msk [vmem:[#allocation2 + $0x10] sm:$0x1] %vm919, %v2230
        %p2234 = scmp.eq.s32.totalorder %s36, 1
        // Predicated region
        $region93: #{clip_vision_encoder_forward.1} parent=87 // pred_check
          %p2235 = pneg %p2234
        $region94: #{clip_vision_encoder_forward.1} parent=87 // pred_check_branch
          %2237 = sbr.rel (%p2235) target = $region96
        $region95: #{clip_vision_encoder_forward.1} parent=87 // pred_region
          %v2238 = vsel %vm912, %v2228, 0.0
          %v2239 = vsel %vm912, %v2229, 0.0
          %v2240 = vadd.f32 %v2238, %v2239
          %v2241 = vsel %vm919, %v2230, 0.0
          %v2242 = vadd.f32 %v2240, %v2241
          %v2243 = vrot.slane %v2242, 4
          %v2244 = vadd.f32 %v2242, %v2243
          %v2245 = vrot.slane %v2244, 2
          %v2246 = vadd.f32 %v2244, %v2245
          %v2247 = vrot.slane %v2246, 1
          %v2248 = vadd.f32 %v2246, %v2247
          %v2249 = vmul.f32 %v2248, 0.05882353
          %2250 = vst.msk [vmem:[%s700] sm:$0x1] %vm919, %v2249
        $region96: #{clip_vision_encoder_forward.1} parent=87 // pred_fallthru
          _
        %s2251 = sand.u32 %s473, 1
        %s2252 = scalar_lea.sflag [#allocation4], %s2251
        %s2253 = sand.u32 %s473, 1
        %s2254 = scalar_lea.vmem [#allocation3], %s2253
        // Predicated region
        $region97: #{clip_vision_encoder_forward.1} parent=87 // pred_check
          %p2255 = pneg %p483
        $region98: #{clip_vision_encoder_forward.1} parent=87 // pred_check_branch
          %2257 = sbr.rel (%p2255) target = $region100
        $region99: #{clip_vision_encoder_forward.1} parent=87 // pred_region
          %s2259 = ssub.s32 16, 16
          %2260 = vsyncadd %s2252, %s2259
          %s2261 = smul.addr %s35, 16
          %s2262 = scalar_lea.hbm %s17, %s2261
          %s2264 = sshll.u32 %s2254, 4
          %s2265 = int_to_ptr.vmem [resolvable:$true] %s2264
          %2267 = dma.vmem_to_hbm [thread:$0]  %s2265, 16, %s2262, %s2252
        $region100: #{clip_vision_encoder_forward.1} parent=87 // pred_fallthru
          _
      $region88: #{clip_vision_encoder_forward.1} parent=5 // pred_fallthru
        _
      %p2268 = scmp.le.s32.totalorder 2, %s26
      // Predicated region
      $region101: #{clip_vision_encoder_forward.1} parent=5 // pred_check
        %p2269 = pneg %p2268
      $region102: #{clip_vision_encoder_forward.1} parent=5 // pred_check_branch
        %2271 = sbr.rel (%p2269) target = $region104
      $region103: #{clip_vision_encoder_forward.1} parent=5 // pred_region
        %s2272 = ssub.s32 %s26, 2
        // Predicated region
        $region105: #{clip_vision_encoder_forward.1} parent=103 // pred_check
          %p2273 = pneg %p489
        $region106: #{clip_vision_encoder_forward.1} parent=103 // pred_check_branch
          %2275 = sbr.rel (%p2273) target = $region108
        $region107: #{clip_vision_encoder_forward.1} parent=103 // pred_region
          %s2276 = sand.u32 %s474, 1
          %s2277 = scalar_lea.sflag [#allocation4], %s2276
          %s2278 = sand.u32 %s474, 1
          %s2279 = scalar_lea.vmem [#allocation3], %s2278
          %2280 = dma.done %s2277, 16
        $region108: #{clip_vision_encoder_forward.1} parent=103 // pred_fallthru
          _
      $region104: #{clip_vision_encoder_forward.1} parent=5 // pred_fallthru
        _
    $region6: #{clip_vision_encoder_forward.1} parent=1 // loop_footer
      %s30 = sadd.s32 1, %s26
    $region7: #{clip_vision_encoder_forward.1} parent=1 // loop_footer_branch
      %25 = sbr.rel target = $region3
    $region8: #{clip_vision_encoder_forward.1} parent=1 // loop_exit
      _
    %2281 = vsyncpa [#allocation4], 1
    %s2282 = scalar_lea.sflag [#allocation4], 1
    %2283 = vsyncpa %s2282, 1

</llo_original>
